<compile_context>
chip_gen: v7x
topology: tpu7x:2x2x1
jax: 0.10.0
libtpu: 0.0.40
codegen_flags: <defaults>
</compile_context>

<pallas_src>
import functools

import jax
import jax.numpy as jnp
from jax import lax
from jax.experimental import pallas as pl
from jax.experimental.pallas import tpu as pltpu

SCALER = 20.0
EPS_POOL = 1e-5
EPS_COS = 1e-8


def _interp_matrix(out_size, in_size, dtype=jnp.float32):
  """Per-axis bilinear interpolation matrix, align_corners=True (matches F.interpolate)."""
  if in_size == 1:
    return jnp.ones((out_size, 1), dtype)
  src = jnp.arange(out_size, dtype=jnp.float32) * (in_size - 1) / (out_size - 1)
  p0 = jnp.clip(jnp.floor(src).astype(jnp.int32), 0, in_size - 2)
  w1 = src - p0.astype(jnp.float32)
  w0 = 1.0 - w1
  rows = jnp.arange(out_size)
  A = jnp.zeros((out_size, in_size), dtype)
  A = A.at[rows, p0].add(w0.astype(dtype))
  A = A.at[rows, p0 + 1].add(w1.astype(dtype))
  return A


# --------------------------------------------------------------------------- fused kernel
def _fewshot_kernel(kron_ref, mdown_ref, fmask_ref, supp_ref, qry_ref,
                    out_ref, loss_ref, *, n_ways, n_shots, E, with_align):
  f32 = jnp.float32
  bf16 = jnp.bfloat16
  K = 1 + n_ways
  R = 2 * K if with_align else K

  kron_t = kron_ref[...]                        # [Sf, Si] f32 flat-bilinear upsample op

  up_rows = []                                  # rows to upsample (pred [+ cos2]) per ep
  ep_counts = []                                # per-episode one-hot pixel counts
  for e in range(E):
    supp_e = supp_ref[e]                        # [C, Sf] bf16
    qry_e = qry_ref[e]                          # [C, Sf] bf16
    mdown_e = mdown_ref[e].astype(bf16)         # [K, Sf] area-normalized downsampled masks

    # masked average pooling (adjoint form): prototypes [K, C], f32 accumulation
    protos = lax.dot_general(mdown_e, supp_e, (((1,), (1,)), ((), ())),
                             preferred_element_type=f32)
    protos_bf = protos.astype(bf16)
    pf = protos_bf.astype(f32)                  # norms from the SAME bf16 representation
    pn = jnp.sqrt(jnp.sum(pf * pf, axis=1, keepdims=True))                # [K, 1]
    qf = qry_e.astype(f32)
    qn = jnp.sqrt(jnp.sum(qf * qf, axis=0, keepdims=True))                # [1, Sf]
    dots = jnp.dot(protos_bf, qry_e, preferred_element_type=f32)          # [K, Sf]
    pred = dots * (SCALER * pl.reciprocal(jnp.maximum(pn * qn, EPS_COS), approx=True))

    if with_align:
      # argmax -> one-hot (first index wins ties) with 1/count folded in
      mx = jnp.max(pred, axis=0, keepdims=True)                           # [1, Sf]
      taken = jnp.zeros(mx.shape, dtype=jnp.bool_)
      onehot_rows, counts = [], []
      for k in range(K):
        hit = jnp.logical_and(pred[k:k + 1, :] == mx, jnp.logical_not(taken))
        taken = jnp.logical_or(taken, hit)
        row = hit.astype(f32)
        cnt = jnp.sum(row)
        counts.append(cnt)
        onehot_rows.append(row * (1.0 / (cnt + EPS_POOL)))
      onehot = jnp.concatenate(onehot_rows, axis=0)                       # [K, Sf]

      qprotos = lax.dot_general(onehot.astype(bf16), qry_e, (((1,), (1,)), ((), ())),
                                preferred_element_type=f32)               # [K, C]
      qprotos_bf = qprotos.astype(bf16)
      qpf = qprotos_bf.astype(f32)
      qpn = jnp.sqrt(jnp.sum(qpf * qpf, axis=1, keepdims=True))           # [K, 1]
      sfeat = supp_e.astype(f32)
      sn = jnp.sqrt(jnp.sum(sfeat * sfeat, axis=0, keepdims=True))        # [1, Sf]
      sdots = jnp.dot(qprotos_bf, supp_e, preferred_element_type=f32)     # [K, Sf]
      cos2 = sdots * (SCALER * pl.reciprocal(jnp.maximum(qpn * sn, EPS_COS), approx=True))

      up_rows.append(jnp.concatenate([pred, cos2], axis=0))               # [2K, Sf]
      ep_counts.append(counts)
    else:
      up_rows.append(pred)                                                # [K, Sf]

  # ONE stacked f32 matmul upsamples every score map of every episode in this block.
  stacked = jnp.concatenate(up_rows, axis=0)                              # [E*R, Sf]
  big_up = jnp.dot(stacked, kron_t, preferred_element_type=f32)           # [E*R, Si]

  for e in range(E):
    out_ref[e] = big_up[e * R:e * R + K, :]                               # lane-dense store

  if not with_align:
    loss_ref[...] = jnp.zeros((1, 1, 1), f32)
    return

  # masked cross-entropy (ignore_index=255) on flat lane-dense [1, Si] logit maps
  total = jnp.float32(0.0)
  for e in range(E):
    fmask_e = fmask_ref[e]                                                # [n_ways, Si] f32
    counts = ep_counts[e]
    base = e * R + K
    z0 = big_up[base:base + 1, :]                                         # bg logits [1, Si]
    for way in range(n_ways):
      z1 = big_up[base + 1 + way:base + 2 + way, :]                       # fg logits [1, Si]
      fm = fmask_e[way:way + 1, :]
      valid = jnp.logical_or(fm == 0.0, fm == 1.0)                        # ignore_index=255
      mz = jnp.maximum(z0, z1)
      lse = mz + jnp.log(1.0 + jnp.exp(-jnp.abs(z0 - z1)))                # 2-class logsumexp
      nll = lse - jnp.where(fm == 1.0, z1, z0)
      vcnt = jnp.sum(valid.astype(f32))
      ce = jnp.sum(jnp.where(valid, nll, 0.0)) / jnp.maximum(vcnt, 1.0)
      include = (counts[1 + way] > 0.0).astype(f32)                       # skip_ways gate
      total = total + ce * include
  loss_ref[...] = jnp.broadcast_to(total / float(n_ways * n_shots), (1, 1, 1))


# --------------------------------------------------------------------------------- wrapper
def fewshot_forward(supp_feat, fore_mask, back_mask, qry_feat, training=True):
  B, C, Hf, Wf = supp_feat.shape
  _, n_ways, H, W = fore_mask.shape
  n_shots = 1
  K = 1 + n_ways
  Sf, Si = Hf * Wf, H * W

  # Two grid steps keep both v7x TensorCores busy; on single-TC v5e/v6e the extra step is
  # one ~0.35us fixed cost, while all episodes of a step share one kernel invocation.
  G = 2 if (B >= 2 and B % 2 == 0) else 1
  E = B // G

  A_h = _interp_matrix(H, Hf)                   # [H, Hf]
  A_w = _interp_matrix(W, Wf)                   # [W, Wf]
  kron_t = jnp.kron(A_h, A_w).T                 # [Sf, Si] flat bilinear upsample (adjoint)

  masks = jnp.concatenate([back_mask, fore_mask], axis=1).astype(jnp.float32)  # [B,K,H,W]
  # adjoint-downsampled, area-normalized masks: one batched XLA einsum, done once.
  mdown = jnp.einsum('hp,bkhw,wq->bkpq', A_h, masks, A_w)
  mdown = mdown / (masks.sum(axis=(2, 3))[..., None, None] + EPS_POOL)
  mdown = mdown.reshape(B, K, Sf)

  fmask_flat = fore_mask.reshape(B, n_ways, Si).astype(jnp.float32)       # lane-dense masks
  supp_flat = supp_feat.reshape(B, C, Sf).astype(jnp.bfloat16)
  qry_flat = qry_feat.reshape(B, C, Sf).astype(jnp.bfloat16)

  kernel = functools.partial(_fewshot_kernel, n_ways=n_ways, n_shots=n_shots, E=E,
                             with_align=bool(training))

  mxu_flops = 8 * K * C * Sf + 4 * K * Sf * Si
  vpu_flops = 6 * C * Sf + 12 * n_ways * Si
  cost = pl.CostEstimate(
      flops=B * (mxu_flops + vpu_flops),
      transcendentals=B * (2 * K * Sf + 2 * n_ways * Si),
      bytes_accessed=(Sf * Si * 4
                      + B * (K * Sf * 4 + n_ways * Si * 4 + 4 * C * Sf + K * Si * 4)
                      + G * 4))

  out_flat, loss = pl.pallas_call(
      kernel,
      out_shape=(jax.ShapeDtypeStruct((B, K, Si), jnp.float32),
                 jax.ShapeDtypeStruct((G, 1, 1), jnp.float32)),
      grid=(G,),
      in_specs=[
          pl.BlockSpec((Sf, Si), lambda g: (0, 0)),             # kron_t (grid-invariant)
          pl.BlockSpec((E, K, Sf), lambda g: (g, 0, 0)),        # downsampled masks
          pl.BlockSpec((E, n_ways, Si), lambda g: (g, 0, 0)),   # fg masks (flat, CE branch)
          pl.BlockSpec((E, C, Sf), lambda g: (g, 0, 0)),        # support features (bf16)
          pl.BlockSpec((E, C, Sf), lambda g: (g, 0, 0)),        # query features (bf16)
      ],
      out_specs=(pl.BlockSpec((E, K, Si), lambda g: (g, 0, 0)),
                 pl.BlockSpec((1, 1, 1), lambda g: (g, 0, 0))),
      compiler_params=pltpu.CompilerParams(dimension_semantics=("parallel",)),
      cost_estimate=cost,
  )(kron_t, mdown, fmask_flat, supp_flat, qry_flat)

  # [B, K, Si] -> [B, K, H, W]   (cheap layout glue outside the kernel)
  output = out_flat.reshape(B, K, H, W)
  if not training:
    return output, jnp.float32(0.0)
  align_loss = jnp.sum(loss) / B
  return output, align_loss


# ------------------------------------------------------------------------ pure-JAX reference
def ref_forward(supp_feat, fore_mask, back_mask, qry_feat, training=True):
  B, C, Hf, Wf = supp_feat.shape
  _, n_ways, H, W = fore_mask.shape
  A_h, A_w = _interp_matrix(H, Hf), _interp_matrix(W, Wf)

  supp_up = jnp.einsum('ip,bcpq,jq->bcij', A_h, supp_feat, A_w)
  masks = jnp.concatenate([back_mask, fore_mask], axis=1)
  protos = jnp.einsum('bchw,bkhw->bkc', supp_up, masks) / (masks.sum((2, 3))[..., None] + EPS_POOL)
  qn = jnp.sqrt(jnp.sum(qry_feat ** 2, axis=1))
  pn = jnp.sqrt(jnp.sum(protos ** 2, axis=2))
  dots = jnp.einsum('bkc,bcpq->bkpq', protos, qry_feat)
  pred = dots / jnp.maximum(pn[:, :, None, None] * qn[:, None], EPS_COS) * SCALER
  out = jnp.einsum('ip,bkpq,jq->bkij', A_h, pred, A_w)
  if not training:
    return out, 0.0

  onehot = jax.nn.one_hot(jnp.argmax(pred, axis=1), 1 + n_ways, axis=1, dtype=jnp.float32)
  counts = onehot.sum((2, 3))
  qprotos = jnp.einsum('bcpq,bkpq->bkc', qry_feat, onehot) / (counts[..., None] + EPS_POOL)
  sn = jnp.sqrt(jnp.sum(supp_feat ** 2, axis=1))
  qpn = jnp.sqrt(jnp.sum(qprotos ** 2, axis=2))
  sdots = jnp.einsum('bkc,bcpq->bkpq', qprotos, supp_feat)
  scos = sdots / jnp.maximum(qpn[:, :, None, None] * sn[:, None], EPS_COS) * SCALER
  loss = jnp.zeros((B,), jnp.float32)
  for way in range(n_ways):
    pair = jnp.stack([scos[:, 0], scos[:, way + 1]], axis=1)
    pair_up = jnp.einsum('ip,bkpq,jq->bkij', A_h, pair, A_w)
    fm = fore_mask[:, way]
    labels = jnp.where(fm == 1, 1, jnp.where(fm == 0, 0, 255)).astype(jnp.int32)
    logz = jax.nn.log_softmax(pair_up, axis=1)
    valid = labels != 255
    lbl = jnp.where(valid, labels, 0)
    nll = -jnp.take_along_axis(logz, lbl[:, None], axis=1)[:, 0]
    ce = jnp.sum(nll * valid, axis=(1, 2)) / jnp.maximum(valid.sum((1, 2)), 1)
    loss = loss + ce * (counts[:, way + 1] > 0).astype(jnp.float32) / n_ways
  return out, jnp.sum(loss) / B


if __name__ == "__main__":
  # batch_size=4, n_ways=2, n_shots=1 are hard-coded in FewShotSeg.forward
  B, C, Hf, Wf = 4, 32, 8, 8            # feature maps
  H, W, n_ways = 16, 16, 2              # mask / image resolution

  key = jax.random.PRNGKey(0)
  k1, k2, k3, k4 = jax.random.split(key, 4)
  # Features are made bf16-representable so the comparison against the f32 reference
  # measures kernel rounding (bf16 MXU operands / EUP approx reciprocal), not input casts.
  supp_feat = jax.random.normal(k1, (B, C, Hf, Wf), jnp.float32)
  supp_feat = supp_feat.astype(jnp.bfloat16).astype(jnp.float32)
  qry_feat = jax.random.normal(k2, (B, C, Hf, Wf), jnp.float32)
  qry_feat = qry_feat.astype(jnp.bfloat16).astype(jnp.float32)
  fore_mask = (jax.random.uniform(k3, (B, n_ways, H, W)) > 0.5).astype(jnp.float32)
  back_mask = (jax.random.uniform(k4, (B, 1, H, W)) > 0.5).astype(jnp.float32)

  output, align_loss = fewshot_forward(supp_feat, fore_mask, back_mask, qry_feat, training=True)
  output = jax.block_until_ready(output)
  align_loss = jax.block_until_ready(align_loss)

  ref_out, ref_loss = ref_forward(supp_feat, fore_mask, back_mask, qry_feat, training=True)

  assert output.shape == (B, 1 + n_ways, H, W)
  assert bool(jnp.all(jnp.isfinite(output))) and bool(jnp.isfinite(align_loss))
  # Outputs are cosine*20 (O(20)); bf16 MXU operands + approx reciprocal vs the f32
  # reference -> sub-percent errors; argmax near-ties can nudge the align loss slightly.
  assert bool(jnp.allclose(output, ref_out, atol=0.25, rtol=0.02)), "output mismatch vs reference"
  assert float(jnp.mean(jnp.abs(output - ref_out))) < 0.05, "output mean error too large"
  assert float(jnp.abs(align_loss - ref_loss)) < 0.2, "align_loss mismatch vs reference"

  print("KERNEL_OK")
</pallas_src>

<mosaic_0001>
module attributes {stable_mosaic.version = 11 : i64} {
  func.func @_fewshot_kernel(%arg0: i32, %arg1: memref<64x256xf32, #tpu.memory_space<vmem>>, %arg2: memref<2x3x64xf32, #tpu.memory_space<vmem>>, %arg3: memref<2x2x256xf32, #tpu.memory_space<vmem>>, %arg4: memref<2x32x64xbf16, #tpu.memory_space<vmem>>, %arg5: memref<2x32x64xbf16, #tpu.memory_space<vmem>>, %arg6: memref<2x3x256xf32, #tpu.memory_space<vmem>>, %arg7: memref<1x1x1xf32, #tpu.memory_space<vmem>>) attributes {dimension_semantics = [#tpu.dimension_semantics<parallel>], iteration_bounds = array<i64: 2>, scalar_prefetch = 0 : i64, scratch_operands = 0 : i64, tpu.core_type = #tpu.core_type<tc>, window_params = [{pipeline_mode = #tpu.pipeline_mode<synchronous>, transform_indices = @transform_0, window_bounds = array<i64: 64, 256>}, {transform_indices = @transform_1, window_bounds = array<i64: 2, 3, 64>}, {transform_indices = @transform_2, window_bounds = array<i64: 2, 2, 256>}, {transform_indices = @transform_3, window_bounds = array<i64: 2, 32, 64>}, {transform_indices = @transform_4, window_bounds = array<i64: 2, 32, 64>}, {transform_indices = @transform_5, window_bounds = array<i64: 2, 3, 256>}, {transform_indices = @transform_6, window_bounds = array<i64: 1, 1, 1>}]} {
    %c0 = arith.constant 0 : index
    %c0_0 = arith.constant 0 : index
    %0 = vector.load %arg1[%c0, %c0_0] : memref<64x256xf32, #tpu.memory_space<vmem>>, vector<64x256xf32>
    %c0_1 = arith.constant 0 : index
    %c0_2 = arith.constant 0 : index
    %c0_3 = arith.constant 0 : index
    %1 = vector.load %arg4[%c0_1, %c0_2, %c0_3] : memref<2x32x64xbf16, #tpu.memory_space<vmem>>, vector<1x32x64xbf16>
    %2 = vector.shape_cast %1 : vector<1x32x64xbf16> to vector<32x64xbf16>
    %c0_4 = arith.constant 0 : index
    %c0_5 = arith.constant 0 : index
    %c0_6 = arith.constant 0 : index
    %3 = vector.load %arg5[%c0_4, %c0_5, %c0_6] : memref<2x32x64xbf16, #tpu.memory_space<vmem>>, vector<1x32x64xbf16>
    %4 = vector.shape_cast %3 : vector<1x32x64xbf16> to vector<32x64xbf16>
    %c0_7 = arith.constant 0 : index
    %c0_8 = arith.constant 0 : index
    %c0_9 = arith.constant 0 : index
    %5 = vector.load %arg2[%c0_7, %c0_8, %c0_9] : memref<2x3x64xf32, #tpu.memory_space<vmem>>, vector<1x3x64xf32>
    %6 = vector.shape_cast %5 : vector<1x3x64xf32> to vector<3x64xf32>
    %7 = arith.truncf %6 : vector<3x64xf32> to vector<3x64xbf16>
    %cst = arith.constant dense<0.000000e+00> : vector<3x32xf32>
    %8 = tpu.matmul %7, %2, %cst {dimension_numbers = #tpu.dot_dimension_numbers<[1], [1], [0], [0], [0, 0, 1, 0], [], []>} : vector<3x64xbf16>, vector<32x64xbf16>, vector<3x32xf32> -> vector<3x32xf32>
    %9 = arith.truncf %8 : vector<3x32xf32> to vector<3x32xbf16>
    %10 = arith.extf %9 : vector<3x32xbf16> to vector<3x32xf32>
    %11 = arith.mulf %10, %10 : vector<3x32xf32>
    %cst_10 = arith.constant dense<0.000000e+00> : vector<3xf32>
    %12 = vector.multi_reduction <add>, %11, %cst_10 [1] : vector<3x32xf32> to vector<3xf32>
    %13 = vector.shape_cast %12 : vector<3xf32> to vector<3x1xf32>
    %14 = math.sqrt %13 : vector<3x1xf32>
    %15 = arith.extf %4 : vector<32x64xbf16> to vector<32x64xf32>
    %16 = arith.mulf %15, %15 : vector<32x64xf32>
    %cst_11 = arith.constant dense<0.000000e+00> : vector<64xf32>
    %17 = vector.multi_reduction <add>, %16, %cst_11 [0] : vector<32x64xf32> to vector<64xf32>
    %18 = vector.shape_cast %17 : vector<64xf32> to vector<1x64xf32>
    %19 = math.sqrt %18 : vector<1x64xf32>
    %cst_12 = arith.constant dense<0.000000e+00> : vector<3x64xf32>
    %20 = tpu.matmul %9, %4, %cst_12 {dimension_numbers = #tpu.dot_dimension_numbers<[1], [0], [0], [1], [0, 0, 1, 1], [], []>} : vector<3x32xbf16>, vector<32x64xbf16>, vector<3x64xf32> -> vector<3x64xf32>
    %21 = vector.broadcast %14 : vector<3x1xf32> to vector<3x64xf32>
    %22 = vector.broadcast %19 : vector<1x64xf32> to vector<3x64xf32>
    %23 = arith.mulf %21, %22 : vector<3x64xf32>
    %cst_13 = arith.constant 9.99999993E-9 : f32
    %24 = vector.broadcast %cst_13 : f32 to vector<3x64xf32>
    %25 = arith.maximumf %23, %24 : vector<3x64xf32>
    %26 = tpu.reciprocal %25 {approx = true} : vector<3x64xf32> -> vector<3x64xf32>
    %cst_14 = arith.constant 2.000000e+01 : f32
    %27 = vector.broadcast %cst_14 : f32 to vector<3x64xf32>
    %28 = arith.mulf %27, %26 : vector<3x64xf32>
    %29 = arith.mulf %20, %28 : vector<3x64xf32>
    %cst_15 = arith.constant dense<0xFF800000> : vector<64xf32>
    %30 = vector.multi_reduction <maximumf>, %29, %cst_15 [0] : vector<3x64xf32> to vector<64xf32>
    %31 = vector.shape_cast %30 : vector<64xf32> to vector<1x64xf32>
    %false = arith.constant false
    %32 = vector.broadcast %false : i1 to vector<1x64xi1>
    %33 = vector.extract_strided_slice %29 {offsets = [0, 0], sizes = [1, 64], strides = [1, 1]} : vector<3x64xf32> to vector<1x64xf32>
    %34 = arith.cmpf oeq, %33, %31 : vector<1x64xf32>
    %cst_16 = arith.constant dense<true> : vector<1x64xi1>
    %35 = arith.xori %32, %cst_16 : vector<1x64xi1>
    %36 = arith.andi %34, %35 : vector<1x64xi1>
    %37 = arith.ori %32, %36 : vector<1x64xi1>
    %38 = arith.extui %36 : vector<1x64xi1> to vector<1x64xi32>
    %39 = arith.sitofp %38 : vector<1x64xi32> to vector<1x64xf32>
    %40 = vector.shape_cast %39 : vector<1x64xf32> to vector<1x1x64xf32>
    %cst_17 = arith.constant dense<0.000000e+00> : vector<1xf32>
    %41 = vector.multi_reduction <add>, %40, %cst_17 [1, 2] : vector<1x1x64xf32> to vector<1xf32>
    %42 = vector.shape_cast %41 : vector<1xf32> to vector<1x1x1xf32>
    %43 = vector.extract %42[0, 0, 0] : f32 from vector<1x1x1xf32>
    %cst_18 = arith.constant 9.99999974E-6 : f32
    %44 = arith.addf %43, %cst_18 : f32
    %cst_19 = arith.constant 1.000000e+00 : f32
    %45 = arith.divf %cst_19, %44 : f32
    %46 = vector.broadcast %45 : f32 to vector<1x64xf32>
    %47 = arith.mulf %39, %46 : vector<1x64xf32>
    %48 = vector.extract_strided_slice %29 {offsets = [1, 0], sizes = [1, 64], strides = [1, 1]} : vector<3x64xf32> to vector<1x64xf32>
    %49 = arith.cmpf oeq, %48, %31 : vector<1x64xf32>
    %cst_20 = arith.constant dense<true> : vector<1x64xi1>
    %50 = arith.xori %37, %cst_20 : vector<1x64xi1>
    %51 = arith.andi %49, %50 : vector<1x64xi1>
    %52 = arith.ori %37, %51 : vector<1x64xi1>
    %53 = arith.extui %51 : vector<1x64xi1> to vector<1x64xi32>
    %54 = arith.sitofp %53 : vector<1x64xi32> to vector<1x64xf32>
    %55 = vector.shape_cast %54 : vector<1x64xf32> to vector<1x1x64xf32>
    %cst_21 = arith.constant dense<0.000000e+00> : vector<1xf32>
    %56 = vector.multi_reduction <add>, %55, %cst_21 [1, 2] : vector<1x1x64xf32> to vector<1xf32>
    %57 = vector.shape_cast %56 : vector<1xf32> to vector<1x1x1xf32>
    %58 = vector.extract %57[0, 0, 0] : f32 from vector<1x1x1xf32>
    %cst_22 = arith.constant 9.99999974E-6 : f32
    %59 = arith.addf %58, %cst_22 : f32
    %cst_23 = arith.constant 1.000000e+00 : f32
    %60 = arith.divf %cst_23, %59 : f32
    %61 = vector.broadcast %60 : f32 to vector<1x64xf32>
    %62 = arith.mulf %54, %61 : vector<1x64xf32>
    %63 = vector.extract_strided_slice %29 {offsets = [2, 0], sizes = [1, 64], strides = [1, 1]} : vector<3x64xf32> to vector<1x64xf32>
    %64 = arith.cmpf oeq, %63, %31 : vector<1x64xf32>
    %cst_24 = arith.constant dense<true> : vector<1x64xi1>
    %65 = arith.xori %52, %cst_24 : vector<1x64xi1>
    %66 = arith.andi %64, %65 : vector<1x64xi1>
    %67 = arith.extui %66 : vector<1x64xi1> to vector<1x64xi32>
    %68 = arith.sitofp %67 : vector<1x64xi32> to vector<1x64xf32>
    %69 = vector.shape_cast %68 : vector<1x64xf32> to vector<1x1x64xf32>
    %cst_25 = arith.constant dense<0.000000e+00> : vector<1xf32>
    %70 = vector.multi_reduction <add>, %69, %cst_25 [1, 2] : vector<1x1x64xf32> to vector<1xf32>
    %71 = vector.shape_cast %70 : vector<1xf32> to vector<1x1x1xf32>
    %72 = vector.extract %71[0, 0, 0] : f32 from vector<1x1x1xf32>
    %cst_26 = arith.constant 9.99999974E-6 : f32
    %73 = arith.addf %72, %cst_26 : f32
    %cst_27 = arith.constant 1.000000e+00 : f32
    %74 = arith.divf %cst_27, %73 : f32
    %75 = vector.broadcast %74 : f32 to vector<1x64xf32>
    %76 = arith.mulf %68, %75 : vector<1x64xf32>
    %77 = tpu.concatenate %47, %62, %76 in 0 : vector<1x64xf32>, vector<1x64xf32>, vector<1x64xf32> -> vector<3x64xf32>
    %78 = arith.truncf %77 : vector<3x64xf32> to vector<3x64xbf16>
    %cst_28 = arith.constant dense<0.000000e+00> : vector<3x32xf32>
    %79 = tpu.matmul %78, %4, %cst_28 {dimension_numbers = #tpu.dot_dimension_numbers<[1], [1], [0], [0], [0, 0, 1, 0], [], []>} : vector<3x64xbf16>, vector<32x64xbf16>, vector<3x32xf32> -> vector<3x32xf32>
    %80 = arith.truncf %79 : vector<3x32xf32> to vector<3x32xbf16>
    %81 = arith.extf %80 : vector<3x32xbf16> to vector<3x32xf32>
    %82 = arith.mulf %81, %81 : vector<3x32xf32>
    %cst_29 = arith.constant dense<0.000000e+00> : vector<3xf32>
    %83 = vector.multi_reduction <add>, %82, %cst_29 [1] : vector<3x32xf32> to vector<3xf32>
    %84 = vector.shape_cast %83 : vector<3xf32> to vector<3x1xf32>
    %85 = math.sqrt %84 : vector<3x1xf32>
    %86 = arith.extf %2 : vector<32x64xbf16> to vector<32x64xf32>
    %87 = arith.mulf %86, %86 : vector<32x64xf32>
    %cst_30 = arith.constant dense<0.000000e+00> : vector<64xf32>
    %88 = vector.multi_reduction <add>, %87, %cst_30 [0] : vector<32x64xf32> to vector<64xf32>
    %89 = vector.shape_cast %88 : vector<64xf32> to vector<1x64xf32>
    %90 = math.sqrt %89 : vector<1x64xf32>
    %cst_31 = arith.constant dense<0.000000e+00> : vector<3x64xf32>
    %91 = tpu.matmul %80, %2, %cst_31 {dimension_numbers = #tpu.dot_dimension_numbers<[1], [0], [0], [1], [0, 0, 1, 1], [], []>} : vector<3x32xbf16>, vector<32x64xbf16>, vector<3x64xf32> -> vector<3x64xf32>
    %92 = vector.broadcast %85 : vector<3x1xf32> to vector<3x64xf32>
    %93 = vector.broadcast %90 : vector<1x64xf32> to vector<3x64xf32>
    %94 = arith.mulf %92, %93 : vector<3x64xf32>
    %cst_32 = arith.constant 9.99999993E-9 : f32
    %95 = vector.broadcast %cst_32 : f32 to vector<3x64xf32>
    %96 = arith.maximumf %94, %95 : vector<3x64xf32>
    %97 = tpu.reciprocal %96 {approx = true} : vector<3x64xf32> -> vector<3x64xf32>
    %cst_33 = arith.constant 2.000000e+01 : f32
    %98 = vector.broadcast %cst_33 : f32 to vector<3x64xf32>
    %99 = arith.mulf %98, %97 : vector<3x64xf32>
    %100 = arith.mulf %91, %99 : vector<3x64xf32>
    %101 = tpu.concatenate %29, %100 in 0 : vector<3x64xf32>, vector<3x64xf32> -> vector<6x64xf32>
    %c1 = arith.constant 1 : index
    %c0_34 = arith.constant 0 : index
    %c0_35 = arith.constant 0 : index
    %102 = vector.load %arg4[%c1, %c0_34, %c0_35] : memref<2x32x64xbf16, #tpu.memory_space<vmem>>, vector<1x32x64xbf16>
    %103 = vector.shape_cast %102 : vector<1x32x64xbf16> to vector<32x64xbf16>
    %c1_36 = arith.constant 1 : index
    %c0_37 = arith.constant 0 : index
    %c0_38 = arith.constant 0 : index
    %104 = vector.load %arg5[%c1_36, %c0_37, %c0_38] : memref<2x32x64xbf16, #tpu.memory_space<vmem>>, vector<1x32x64xbf16>
    %105 = vector.shape_cast %104 : vector<1x32x64xbf16> to vector<32x64xbf16>
    %c1_39 = arith.constant 1 : index
    %c0_40 = arith.constant 0 : index
    %c0_41 = arith.constant 0 : index
    %106 = vector.load %arg2[%c1_39, %c0_40, %c0_41] : memref<2x3x64xf32, #tpu.memory_space<vmem>>, vector<1x3x64xf32>
    %107 = vector.shape_cast %106 : vector<1x3x64xf32> to vector<3x64xf32>
    %108 = arith.truncf %107 : vector<3x64xf32> to vector<3x64xbf16>
    %cst_42 = arith.constant dense<0.000000e+00> : vector<3x32xf32>
    %109 = tpu.matmul %108, %103, %cst_42 {dimension_numbers = #tpu.dot_dimension_numbers<[1], [1], [0], [0], [0, 0, 1, 0], [], []>} : vector<3x64xbf16>, vector<32x64xbf16>, vector<3x32xf32> -> vector<3x32xf32>
    %110 = arith.truncf %109 : vector<3x32xf32> to vector<3x32xbf16>
    %111 = arith.extf %110 : vector<3x32xbf16> to vector<3x32xf32>
    %112 = arith.mulf %111, %111 : vector<3x32xf32>
    %cst_43 = arith.constant dense<0.000000e+00> : vector<3xf32>
    %113 = vector.multi_reduction <add>, %112, %cst_43 [1] : vector<3x32xf32> to vector<3xf32>
    %114 = vector.shape_cast %113 : vector<3xf32> to vector<3x1xf32>
    %115 = math.sqrt %114 : vector<3x1xf32>
    %116 = arith.extf %105 : vector<32x64xbf16> to vector<32x64xf32>
    %117 = arith.mulf %116, %116 : vector<32x64xf32>
    %cst_44 = arith.constant dense<0.000000e+00> : vector<64xf32>
    %118 = vector.multi_reduction <add>, %117, %cst_44 [0] : vector<32x64xf32> to vector<64xf32>
    %119 = vector.shape_cast %118 : vector<64xf32> to vector<1x64xf32>
    %120 = math.sqrt %119 : vector<1x64xf32>
    %cst_45 = arith.constant dense<0.000000e+00> : vector<3x64xf32>
    %121 = tpu.matmul %110, %105, %cst_45 {dimension_numbers = #tpu.dot_dimension_numbers<[1], [0], [0], [1], [0, 0, 1, 1], [], []>} : vector<3x32xbf16>, vector<32x64xbf16>, vector<3x64xf32> -> vector<3x64xf32>
    %122 = vector.broadcast %115 : vector<3x1xf32> to vector<3x64xf32>
    %123 = vector.broadcast %120 : vector<1x64xf32> to vector<3x64xf32>
    %124 = arith.mulf %122, %123 : vector<3x64xf32>
    %cst_46 = arith.constant 9.99999993E-9 : f32
    %125 = vector.broadcast %cst_46 : f32 to vector<3x64xf32>
    %126 = arith.maximumf %124, %125 : vector<3x64xf32>
    %127 = tpu.reciprocal %126 {approx = true} : vector<3x64xf32> -> vector<3x64xf32>
    %cst_47 = arith.constant 2.000000e+01 : f32
    %128 = vector.broadcast %cst_47 : f32 to vector<3x64xf32>
    %129 = arith.mulf %128, %127 : vector<3x64xf32>
    %130 = arith.mulf %121, %129 : vector<3x64xf32>
    %cst_48 = arith.constant dense<0xFF800000> : vector<64xf32>
    %131 = vector.multi_reduction <maximumf>, %130, %cst_48 [0] : vector<3x64xf32> to vector<64xf32>
    %132 = vector.shape_cast %131 : vector<64xf32> to vector<1x64xf32>
    %false_49 = arith.constant false
    %133 = vector.broadcast %false_49 : i1 to vector<1x64xi1>
    %134 = vector.extract_strided_slice %130 {offsets = [0, 0], sizes = [1, 64], strides = [1, 1]} : vector<3x64xf32> to vector<1x64xf32>
    %135 = arith.cmpf oeq, %134, %132 : vector<1x64xf32>
    %cst_50 = arith.constant dense<true> : vector<1x64xi1>
    %136 = arith.xori %133, %cst_50 : vector<1x64xi1>
    %137 = arith.andi %135, %136 : vector<1x64xi1>
    %138 = arith.ori %133, %137 : vector<1x64xi1>
    %139 = arith.extui %137 : vector<1x64xi1> to vector<1x64xi32>
    %140 = arith.sitofp %139 : vector<1x64xi32> to vector<1x64xf32>
    %141 = vector.shape_cast %140 : vector<1x64xf32> to vector<1x1x64xf32>
    %cst_51 = arith.constant dense<0.000000e+00> : vector<1xf32>
    %142 = vector.multi_reduction <add>, %141, %cst_51 [1, 2] : vector<1x1x64xf32> to vector<1xf32>
    %143 = vector.shape_cast %142 : vector<1xf32> to vector<1x1x1xf32>
    %144 = vector.extract %143[0, 0, 0] : f32 from vector<1x1x1xf32>
    %cst_52 = arith.constant 9.99999974E-6 : f32
    %145 = arith.addf %144, %cst_52 : f32
    %cst_53 = arith.constant 1.000000e+00 : f32
    %146 = arith.divf %cst_53, %145 : f32
    %147 = vector.broadcast %146 : f32 to vector<1x64xf32>
    %148 = arith.mulf %140, %147 : vector<1x64xf32>
    %149 = vector.extract_strided_slice %130 {offsets = [1, 0], sizes = [1, 64], strides = [1, 1]} : vector<3x64xf32> to vector<1x64xf32>
    %150 = arith.cmpf oeq, %149, %132 : vector<1x64xf32>
    %cst_54 = arith.constant dense<true> : vector<1x64xi1>
    %151 = arith.xori %138, %cst_54 : vector<1x64xi1>
    %152 = arith.andi %150, %151 : vector<1x64xi1>
    %153 = arith.ori %138, %152 : vector<1x64xi1>
    %154 = arith.extui %152 : vector<1x64xi1> to vector<1x64xi32>
    %155 = arith.sitofp %154 : vector<1x64xi32> to vector<1x64xf32>
    %156 = vector.shape_cast %155 : vector<1x64xf32> to vector<1x1x64xf32>
    %cst_55 = arith.constant dense<0.000000e+00> : vector<1xf32>
    %157 = vector.multi_reduction <add>, %156, %cst_55 [1, 2] : vector<1x1x64xf32> to vector<1xf32>
    %158 = vector.shape_cast %157 : vector<1xf32> to vector<1x1x1xf32>
    %159 = vector.extract %158[0, 0, 0] : f32 from vector<1x1x1xf32>
    %cst_56 = arith.constant 9.99999974E-6 : f32
    %160 = arith.addf %159, %cst_56 : f32
    %cst_57 = arith.constant 1.000000e+00 : f32
    %161 = arith.divf %cst_57, %160 : f32
    %162 = vector.broadcast %161 : f32 to vector<1x64xf32>
    %163 = arith.mulf %155, %162 : vector<1x64xf32>
    %164 = vector.extract_strided_slice %130 {offsets = [2, 0], sizes = [1, 64], strides = [1, 1]} : vector<3x64xf32> to vector<1x64xf32>
    %165 = arith.cmpf oeq, %164, %132 : vector<1x64xf32>
    %cst_58 = arith.constant dense<true> : vector<1x64xi1>
    %166 = arith.xori %153, %cst_58 : vector<1x64xi1>
    %167 = arith.andi %165, %166 : vector<1x64xi1>
    %168 = arith.extui %167 : vector<1x64xi1> to vector<1x64xi32>
    %169 = arith.sitofp %168 : vector<1x64xi32> to vector<1x64xf32>
    %170 = vector.shape_cast %169 : vector<1x64xf32> to vector<1x1x64xf32>
    %cst_59 = arith.constant dense<0.000000e+00> : vector<1xf32>
    %171 = vector.multi_reduction <add>, %170, %cst_59 [1, 2] : vector<1x1x64xf32> to vector<1xf32>
    %172 = vector.shape_cast %171 : vector<1xf32> to vector<1x1x1xf32>
    %173 = vector.extract %172[0, 0, 0] : f32 from vector<1x1x1xf32>
    %cst_60 = arith.constant 9.99999974E-6 : f32
    %174 = arith.addf %173, %cst_60 : f32
    %cst_61 = arith.constant 1.000000e+00 : f32
    %175 = arith.divf %cst_61, %174 : f32
    %176 = vector.broadcast %175 : f32 to vector<1x64xf32>
    %177 = arith.mulf %169, %176 : vector<1x64xf32>
    %178 = tpu.concatenate %148, %163, %177 in 0 : vector<1x64xf32>, vector<1x64xf32>, vector<1x64xf32> -> vector<3x64xf32>
    %179 = arith.truncf %178 : vector<3x64xf32> to vector<3x64xbf16>
    %cst_62 = arith.constant dense<0.000000e+00> : vector<3x32xf32>
    %180 = tpu.matmul %179, %105, %cst_62 {dimension_numbers = #tpu.dot_dimension_numbers<[1], [1], [0], [0], [0, 0, 1, 0], [], []>} : vector<3x64xbf16>, vector<32x64xbf16>, vector<3x32xf32> -> vector<3x32xf32>
    %181 = arith.truncf %180 : vector<3x32xf32> to vector<3x32xbf16>
    %182 = arith.extf %181 : vector<3x32xbf16> to vector<3x32xf32>
    %183 = arith.mulf %182, %182 : vector<3x32xf32>
    %cst_63 = arith.constant dense<0.000000e+00> : vector<3xf32>
    %184 = vector.multi_reduction <add>, %183, %cst_63 [1] : vector<3x32xf32> to vector<3xf32>
    %185 = vector.shape_cast %184 : vector<3xf32> to vector<3x1xf32>
    %186 = math.sqrt %185 : vector<3x1xf32>
    %187 = arith.extf %103 : vector<32x64xbf16> to vector<32x64xf32>
    %188 = arith.mulf %187, %187 : vector<32x64xf32>
    %cst_64 = arith.constant dense<0.000000e+00> : vector<64xf32>
    %189 = vector.multi_reduction <add>, %188, %cst_64 [0] : vector<32x64xf32> to vector<64xf32>
    %190 = vector.shape_cast %189 : vector<64xf32> to vector<1x64xf32>
    %191 = math.sqrt %190 : vector<1x64xf32>
    %cst_65 = arith.constant dense<0.000000e+00> : vector<3x64xf32>
    %192 = tpu.matmul %181, %103, %cst_65 {dimension_numbers = #tpu.dot_dimension_numbers<[1], [0], [0], [1], [0, 0, 1, 1], [], []>} : vector<3x32xbf16>, vector<32x64xbf16>, vector<3x64xf32> -> vector<3x64xf32>
    %193 = vector.broadcast %186 : vector<3x1xf32> to vector<3x64xf32>
    %194 = vector.broadcast %191 : vector<1x64xf32> to vector<3x64xf32>
    %195 = arith.mulf %193, %194 : vector<3x64xf32>
    %cst_66 = arith.constant 9.99999993E-9 : f32
    %196 = vector.broadcast %cst_66 : f32 to vector<3x64xf32>
    %197 = arith.maximumf %195, %196 : vector<3x64xf32>
    %198 = tpu.reciprocal %197 {approx = true} : vector<3x64xf32> -> vector<3x64xf32>
    %cst_67 = arith.constant 2.000000e+01 : f32
    %199 = vector.broadcast %cst_67 : f32 to vector<3x64xf32>
    %200 = arith.mulf %199, %198 : vector<3x64xf32>
    %201 = arith.mulf %192, %200 : vector<3x64xf32>
    %202 = tpu.concatenate %130, %201 in 0 : vector<3x64xf32>, vector<3x64xf32> -> vector<6x64xf32>
    %203 = tpu.concatenate %101, %202 in 0 : vector<6x64xf32>, vector<6x64xf32> -> vector<12x64xf32>
    %cst_68 = arith.constant dense<0.000000e+00> : vector<12x256xf32>
    %204 = tpu.matmul %203, %0, %cst_68 {dimension_numbers = #tpu.dot_dimension_numbers<[1], [0], [0], [1], [0, 0, 1, 1], [], []>} : vector<12x64xf32>, vector<64x256xf32>, vector<12x256xf32> -> vector<12x256xf32>
    %205 = vector.extract_strided_slice %204 {offsets = [0, 0], sizes = [3, 256], strides = [1, 1]} : vector<12x256xf32> to vector<3x256xf32>
    %c0_69 = arith.constant 0 : index
    %c0_70 = arith.constant 0 : index
    %c0_71 = arith.constant 0 : index
    %206 = vector.load %arg6[%c0_69, %c0_70, %c0_71] : memref<2x3x256xf32, #tpu.memory_space<vmem>>, vector<1x3x256xf32>
    %207 = vector.shape_cast %206 : vector<1x3x256xf32> to vector<3x256xf32>
    %208 = vector.shape_cast %205 : vector<3x256xf32> to vector<1x3x256xf32>
    tpu.vector_store %arg6[%c0_69, %c0_70, %c0_71], %208 {strides = array<i32>} : memref<2x3x256xf32, #tpu.memory_space<vmem>>, vector<1x3x256xf32>,
    %209 = vector.extract_strided_slice %204 {offsets = [6, 0], sizes = [3, 256], strides = [1, 1]} : vector<12x256xf32> to vector<3x256xf32>
    %c1_72 = arith.constant 1 : index
    %c0_73 = arith.constant 0 : index
    %c0_74 = arith.constant 0 : index
    %210 = vector.load %arg6[%c1_72, %c0_73, %c0_74] : memref<2x3x256xf32, #tpu.memory_space<vmem>>, vector<1x3x256xf32>
    %211 = vector.shape_cast %210 : vector<1x3x256xf32> to vector<3x256xf32>
    %212 = vector.shape_cast %209 : vector<3x256xf32> to vector<1x3x256xf32>
    tpu.vector_store %arg6[%c1_72, %c0_73, %c0_74], %212 {strides = array<i32>} : memref<2x3x256xf32, #tpu.memory_space<vmem>>, vector<1x3x256xf32>,
    %c0_75 = arith.constant 0 : index
    %c0_76 = arith.constant 0 : index
    %c0_77 = arith.constant 0 : index
    %213 = vector.load %arg3[%c0_75, %c0_76, %c0_77] : memref<2x2x256xf32, #tpu.memory_space<vmem>>, vector<1x2x256xf32>
    %214 = vector.shape_cast %213 : vector<1x2x256xf32> to vector<2x256xf32>
    %215 = vector.extract_strided_slice %204 {offsets = [3, 0], sizes = [1, 256], strides = [1, 1]} : vector<12x256xf32> to vector<1x256xf32>
    %216 = vector.extract_strided_slice %204 {offsets = [4, 0], sizes = [1, 256], strides = [1, 1]} : vector<12x256xf32> to vector<1x256xf32>
    %217 = vector.extract_strided_slice %214 {offsets = [0, 0], sizes = [1, 256], strides = [1, 1]} : vector<2x256xf32> to vector<1x256xf32>
    %cst_78 = arith.constant 0.000000e+00 : f32
    %218 = vector.broadcast %cst_78 : f32 to vector<1x256xf32>
    %219 = arith.cmpf oeq, %217, %218 : vector<1x256xf32>
    %cst_79 = arith.constant 1.000000e+00 : f32
    %220 = vector.broadcast %cst_79 : f32 to vector<1x256xf32>
    %221 = arith.cmpf oeq, %217, %220 : vector<1x256xf32>
    %222 = arith.ori %219, %221 : vector<1x256xi1>
    %223 = arith.maximumf %215, %216 : vector<1x256xf32>
    %224 = arith.subf %215, %216 : vector<1x256xf32>
    %225 = math.absf %224 : vector<1x256xf32>
    %cst_80 = arith.constant 0.000000e+00 : f32
    %226 = vector.broadcast %cst_80 : f32 to vector<1x256xf32>
    %227 = arith.subf %226, %225 : vector<1x256xf32>
    %228 = math.exp %227 : vector<1x256xf32>
    %cst_81 = arith.constant 1.000000e+00 : f32
    %229 = vector.broadcast %cst_81 : f32 to vector<1x256xf32>
    %230 = arith.addf %229, %228 : vector<1x256xf32>
    %231 = math.log %230 : vector<1x256xf32>
    %232 = arith.addf %223, %231 : vector<1x256xf32>
    %cst_82 = arith.constant 1.000000e+00 : f32
    %233 = vector.broadcast %cst_82 : f32 to vector<1x256xf32>
    %234 = arith.cmpf oeq, %217, %233 : vector<1x256xf32>
    %235 = arith.select %234, %216, %215 : vector<1x256xi1>, vector<1x256xf32>
    %236 = arith.subf %232, %235 : vector<1x256xf32>
    %237 = arith.extui %222 : vector<1x256xi1> to vector<1x256xi32>
    %238 = arith.sitofp %237 : vector<1x256xi32> to vector<1x256xf32>
    %239 = vector.shape_cast %238 : vector<1x256xf32> to vector<1x1x256xf32>
    %cst_83 = arith.constant dense<0.000000e+00> : vector<1xf32>
    %240 = vector.multi_reduction <add>, %239, %cst_83 [1, 2] : vector<1x1x256xf32> to vector<1xf32>
    %241 = vector.shape_cast %240 : vector<1xf32> to vector<1x1x1xf32>
    %242 = vector.extract %241[0, 0, 0] : f32 from vector<1x1x1xf32>
    %cst_84 = arith.constant 0.000000e+00 : f32
    %243 = vector.broadcast %cst_84 : f32 to vector<1x256xf32>
    %244 = arith.select %222, %236, %243 : vector<1x256xi1>, vector<1x256xf32>
    %245 = vector.shape_cast %244 : vector<1x256xf32> to vector<1x1x256xf32>
    %cst_85 = arith.constant dense<0.000000e+00> : vector<1xf32>
    %246 = vector.multi_reduction <add>, %245, %cst_85 [1, 2] : vector<1x1x256xf32> to vector<1xf32>
    %247 = vector.shape_cast %246 : vector<1xf32> to vector<1x1x1xf32>
    %248 = vector.extract %247[0, 0, 0] : f32 from vector<1x1x1xf32>
    %cst_86 = arith.constant 1.000000e+00 : f32
    %249 = arith.maximumf %242, %cst_86 : f32
    %250 = arith.divf %248, %249 : f32
    %cst_87 = arith.constant 0.000000e+00 : f32
    %251 = arith.cmpf ogt, %58, %cst_87 : f32
    %252 = arith.extui %251 : i1 to i32
    %253 = arith.sitofp %252 : i32 to f32
    %254 = arith.mulf %250, %253 : f32
    %cst_88 = arith.constant 0.000000e+00 : f32
    %255 = arith.addf %cst_88, %254 : f32
    %256 = vector.extract_strided_slice %204 {offsets = [5, 0], sizes = [1, 256], strides = [1, 1]} : vector<12x256xf32> to vector<1x256xf32>
    %257 = vector.extract_strided_slice %214 {offsets = [1, 0], sizes = [1, 256], strides = [1, 1]} : vector<2x256xf32> to vector<1x256xf32>
    %cst_89 = arith.constant 0.000000e+00 : f32
    %258 = vector.broadcast %cst_89 : f32 to vector<1x256xf32>
    %259 = arith.cmpf oeq, %257, %258 : vector<1x256xf32>
    %cst_90 = arith.constant 1.000000e+00 : f32
    %260 = vector.broadcast %cst_90 : f32 to vector<1x256xf32>
    %261 = arith.cmpf oeq, %257, %260 : vector<1x256xf32>
    %262 = arith.ori %259, %261 : vector<1x256xi1>
    %263 = arith.maximumf %215, %256 : vector<1x256xf32>
    %264 = arith.subf %215, %256 : vector<1x256xf32>
    %265 = math.absf %264 : vector<1x256xf32>
    %cst_91 = arith.constant 0.000000e+00 : f32
    %266 = vector.broadcast %cst_91 : f32 to vector<1x256xf32>
    %267 = arith.subf %266, %265 : vector<1x256xf32>
    %268 = math.exp %267 : vector<1x256xf32>
    %cst_92 = arith.constant 1.000000e+00 : f32
    %269 = vector.broadcast %cst_92 : f32 to vector<1x256xf32>
    %270 = arith.addf %269, %268 : vector<1x256xf32>
    %271 = math.log %270 : vector<1x256xf32>
    %272 = arith.addf %263, %271 : vector<1x256xf32>
    %cst_93 = arith.constant 1.000000e+00 : f32
    %273 = vector.broadcast %cst_93 : f32 to vector<1x256xf32>
    %274 = arith.cmpf oeq, %257, %273 : vector<1x256xf32>
    %275 = arith.select %274, %256, %215 : vector<1x256xi1>, vector<1x256xf32>
    %276 = arith.subf %272, %275 : vector<1x256xf32>
    %277 = arith.extui %262 : vector<1x256xi1> to vector<1x256xi32>
    %278 = arith.sitofp %277 : vector<1x256xi32> to vector<1x256xf32>
    %279 = vector.shape_cast %278 : vector<1x256xf32> to vector<1x1x256xf32>
    %cst_94 = arith.constant dense<0.000000e+00> : vector<1xf32>
    %280 = vector.multi_reduction <add>, %279, %cst_94 [1, 2] : vector<1x1x256xf32> to vector<1xf32>
    %281 = vector.shape_cast %280 : vector<1xf32> to vector<1x1x1xf32>
    %282 = vector.extract %281[0, 0, 0] : f32 from vector<1x1x1xf32>
    %cst_95 = arith.constant 0.000000e+00 : f32
    %283 = vector.broadcast %cst_95 : f32 to vector<1x256xf32>
    %284 = arith.select %262, %276, %283 : vector<1x256xi1>, vector<1x256xf32>
    %285 = vector.shape_cast %284 : vector<1x256xf32> to vector<1x1x256xf32>
    %cst_96 = arith.constant dense<0.000000e+00> : vector<1xf32>
    %286 = vector.multi_reduction <add>, %285, %cst_96 [1, 2] : vector<1x1x256xf32> to vector<1xf32>
    %287 = vector.shape_cast %286 : vector<1xf32> to vector<1x1x1xf32>
    %288 = vector.extract %287[0, 0, 0] : f32 from vector<1x1x1xf32>
    %cst_97 = arith.constant 1.000000e+00 : f32
    %289 = arith.maximumf %282, %cst_97 : f32
    %290 = arith.divf %288, %289 : f32
    %cst_98 = arith.constant 0.000000e+00 : f32
    %291 = arith.cmpf ogt, %72, %cst_98 : f32
    %292 = arith.extui %291 : i1 to i32
    %293 = arith.sitofp %292 : i32 to f32
    %294 = arith.mulf %290, %293 : f32
    %295 = arith.addf %255, %294 : f32
    %c1_99 = arith.constant 1 : index
    %c0_100 = arith.constant 0 : index
    %c0_101 = arith.constant 0 : index
    %296 = vector.load %arg3[%c1_99, %c0_100, %c0_101] : memref<2x2x256xf32, #tpu.memory_space<vmem>>, vector<1x2x256xf32>
    %297 = vector.shape_cast %296 : vector<1x2x256xf32> to vector<2x256xf32>
    %298 = vector.extract_strided_slice %204 {offsets = [9, 0], sizes = [1, 256], strides = [1, 1]} : vector<12x256xf32> to vector<1x256xf32>
    %299 = vector.extract_strided_slice %204 {offsets = [10, 0], sizes = [1, 256], strides = [1, 1]} : vector<12x256xf32> to vector<1x256xf32>
    %300 = vector.extract_strided_slice %297 {offsets = [0, 0], sizes = [1, 256], strides = [1, 1]} : vector<2x256xf32> to vector<1x256xf32>
    %cst_102 = arith.constant 0.000000e+00 : f32
    %301 = vector.broadcast %cst_102 : f32 to vector<1x256xf32>
    %302 = arith.cmpf oeq, %300, %301 : vector<1x256xf32>
    %cst_103 = arith.constant 1.000000e+00 : f32
    %303 = vector.broadcast %cst_103 : f32 to vector<1x256xf32>
    %304 = arith.cmpf oeq, %300, %303 : vector<1x256xf32>
    %305 = arith.ori %302, %304 : vector<1x256xi1>
    %306 = arith.maximumf %298, %299 : vector<1x256xf32>
    %307 = arith.subf %298, %299 : vector<1x256xf32>
    %308 = math.absf %307 : vector<1x256xf32>
    %cst_104 = arith.constant 0.000000e+00 : f32
    %309 = vector.broadcast %cst_104 : f32 to vector<1x256xf32>
    %310 = arith.subf %309, %308 : vector<1x256xf32>
    %311 = math.exp %310 : vector<1x256xf32>
    %cst_105 = arith.constant 1.000000e+00 : f32
    %312 = vector.broadcast %cst_105 : f32 to vector<1x256xf32>
    %313 = arith.addf %312, %311 : vector<1x256xf32>
    %314 = math.log %313 : vector<1x256xf32>
    %315 = arith.addf %306, %314 : vector<1x256xf32>
    %cst_106 = arith.constant 1.000000e+00 : f32
    %316 = vector.broadcast %cst_106 : f32 to vector<1x256xf32>
    %317 = arith.cmpf oeq, %300, %316 : vector<1x256xf32>
    %318 = arith.select %317, %299, %298 : vector<1x256xi1>, vector<1x256xf32>
    %319 = arith.subf %315, %318 : vector<1x256xf32>
    %320 = arith.extui %305 : vector<1x256xi1> to vector<1x256xi32>
    %321 = arith.sitofp %320 : vector<1x256xi32> to vector<1x256xf32>
    %322 = vector.shape_cast %321 : vector<1x256xf32> to vector<1x1x256xf32>
    %cst_107 = arith.constant dense<0.000000e+00> : vector<1xf32>
    %323 = vector.multi_reduction <add>, %322, %cst_107 [1, 2] : vector<1x1x256xf32> to vector<1xf32>
    %324 = vector.shape_cast %323 : vector<1xf32> to vector<1x1x1xf32>
    %325 = vector.extract %324[0, 0, 0] : f32 from vector<1x1x1xf32>
    %cst_108 = arith.constant 0.000000e+00 : f32
    %326 = vector.broadcast %cst_108 : f32 to vector<1x256xf32>
    %327 = arith.select %305, %319, %326 : vector<1x256xi1>, vector<1x256xf32>
    %328 = vector.shape_cast %327 : vector<1x256xf32> to vector<1x1x256xf32>
    %cst_109 = arith.constant dense<0.000000e+00> : vector<1xf32>
    %329 = vector.multi_reduction <add>, %328, %cst_109 [1, 2] : vector<1x1x256xf32> to vector<1xf32>
    %330 = vector.shape_cast %329 : vector<1xf32> to vector<1x1x1xf32>
    %331 = vector.extract %330[0, 0, 0] : f32 from vector<1x1x1xf32>
    %cst_110 = arith.constant 1.000000e+00 : f32
    %332 = arith.maximumf %325, %cst_110 : f32
    %333 = arith.divf %331, %332 : f32
    %cst_111 = arith.constant 0.000000e+00 : f32
    %334 = arith.cmpf ogt, %159, %cst_111 : f32
    %335 = arith.extui %334 : i1 to i32
    %336 = arith.sitofp %335 : i32 to f32
    %337 = arith.mulf %333, %336 : f32
    %338 = arith.addf %295, %337 : f32
    %339 = vector.extract_strided_slice %204 {offsets = [11, 0], sizes = [1, 256], strides = [1, 1]} : vector<12x256xf32> to vector<1x256xf32>
    %340 = vector.extract_strided_slice %297 {offsets = [1, 0], sizes = [1, 256], strides = [1, 1]} : vector<2x256xf32> to vector<1x256xf32>
    %cst_112 = arith.constant 0.000000e+00 : f32
    %341 = vector.broadcast %cst_112 : f32 to vector<1x256xf32>
    %342 = arith.cmpf oeq, %340, %341 : vector<1x256xf32>
    %cst_113 = arith.constant 1.000000e+00 : f32
    %343 = vector.broadcast %cst_113 : f32 to vector<1x256xf32>
    %344 = arith.cmpf oeq, %340, %343 : vector<1x256xf32>
    %345 = arith.ori %342, %344 : vector<1x256xi1>
    %346 = arith.maximumf %298, %339 : vector<1x256xf32>
    %347 = arith.subf %298, %339 : vector<1x256xf32>
    %348 = math.absf %347 : vector<1x256xf32>
    %cst_114 = arith.constant 0.000000e+00 : f32
    %349 = vector.broadcast %cst_114 : f32 to vector<1x256xf32>
    %350 = arith.subf %349, %348 : vector<1x256xf32>
    %351 = math.exp %350 : vector<1x256xf32>
    %cst_115 = arith.constant 1.000000e+00 : f32
    %352 = vector.broadcast %cst_115 : f32 to vector<1x256xf32>
    %353 = arith.addf %352, %351 : vector<1x256xf32>
    %354 = math.log %353 : vector<1x256xf32>
    %355 = arith.addf %346, %354 : vector<1x256xf32>
    %cst_116 = arith.constant 1.000000e+00 : f32
    %356 = vector.broadcast %cst_116 : f32 to vector<1x256xf32>
    %357 = arith.cmpf oeq, %340, %356 : vector<1x256xf32>
    %358 = arith.select %357, %339, %298 : vector<1x256xi1>, vector<1x256xf32>
    %359 = arith.subf %355, %358 : vector<1x256xf32>
    %360 = arith.extui %345 : vector<1x256xi1> to vector<1x256xi32>
    %361 = arith.sitofp %360 : vector<1x256xi32> to vector<1x256xf32>
    %362 = vector.shape_cast %361 : vector<1x256xf32> to vector<1x1x256xf32>
    %cst_117 = arith.constant dense<0.000000e+00> : vector<1xf32>
    %363 = vector.multi_reduction <add>, %362, %cst_117 [1, 2] : vector<1x1x256xf32> to vector<1xf32>
    %364 = vector.shape_cast %363 : vector<1xf32> to vector<1x1x1xf32>
    %365 = vector.extract %364[0, 0, 0] : f32 from vector<1x1x1xf32>
    %cst_118 = arith.constant 0.000000e+00 : f32
    %366 = vector.broadcast %cst_118 : f32 to vector<1x256xf32>
    %367 = arith.select %345, %359, %366 : vector<1x256xi1>, vector<1x256xf32>
    %368 = vector.shape_cast %367 : vector<1x256xf32> to vector<1x1x256xf32>
    %cst_119 = arith.constant dense<0.000000e+00> : vector<1xf32>
    %369 = vector.multi_reduction <add>, %368, %cst_119 [1, 2] : vector<1x1x256xf32> to vector<1xf32>
    %370 = vector.shape_cast %369 : vector<1xf32> to vector<1x1x1xf32>
    %371 = vector.extract %370[0, 0, 0] : f32 from vector<1x1x1xf32>
    %cst_120 = arith.constant 1.000000e+00 : f32
    %372 = arith.maximumf %365, %cst_120 : f32
    %373 = arith.divf %371, %372 : f32
    %cst_121 = arith.constant 0.000000e+00 : f32
    %374 = arith.cmpf ogt, %173, %cst_121 : f32
    %375 = arith.extui %374 : i1 to i32
    %376 = arith.sitofp %375 : i32 to f32
    %377 = arith.mulf %373, %376 : f32
    %378 = arith.addf %338, %377 : f32
    %cst_122 = arith.constant 2.000000e+00 : f32
    %379 = arith.divf %378, %cst_122 : f32
    %380 = vector.broadcast %379 : f32 to vector<1x1x1xf32>
    %c0_123 = arith.constant 0 : index
    %c0_124 = arith.constant 0 : index
    %c0_125 = arith.constant 0 : index
    %381 = vector.load %arg7[%c0_123, %c0_124, %c0_125] : memref<1x1x1xf32, #tpu.memory_space<vmem>>, vector<1x1x1xf32>
    tpu.vector_store %arg7[%c0_123, %c0_124, %c0_125], %380 {strides = array<i32>} : memref<1x1x1xf32, #tpu.memory_space<vmem>>, vector<1x1x1xf32>,
    return
  }
  func.func @transform_0(%arg0: i32) -> (i32, i32) {
    %c0_i32 = arith.constant 0 : i32
    %c0_i32_0 = arith.constant 0 : i32
    %c0_i32_1 = arith.constant 0 : i32
    return %c0_i32, %c0_i32_0 : i32, i32
  }
  func.func @transform_1(%arg0: i32) -> (i32, i32, i32) {
    %c0_i32 = arith.constant 0 : i32
    %c0_i32_0 = arith.constant 0 : i32
    %c0_i32_1 = arith.constant 0 : i32
    return %arg0, %c0_i32, %c0_i32_0 : i32, i32, i32
  }
  func.func @transform_2(%arg0: i32) -> (i32, i32, i32) {
    %c0_i32 = arith.constant 0 : i32
    %c0_i32_0 = arith.constant 0 : i32
    %c0_i32_1 = arith.constant 0 : i32
    return %arg0, %c0_i32, %c0_i32_0 : i32, i32, i32
  }
  func.func @transform_3(%arg0: i32) -> (i32, i32, i32) {
    %c0_i32 = arith.constant 0 : i32
    %c0_i32_0 = arith.constant 0 : i32
    %c0_i32_1 = arith.constant 0 : i32
    return %arg0, %c0_i32, %c0_i32_0 : i32, i32, i32
  }
  func.func @transform_4(%arg0: i32) -> (i32, i32, i32) {
    %c0_i32 = arith.constant 0 : i32
    %c0_i32_0 = arith.constant 0 : i32
    %c0_i32_1 = arith.constant 0 : i32
    return %arg0, %c0_i32, %c0_i32_0 : i32, i32, i32
  }
  func.func @transform_5(%arg0: i32) -> (i32, i32, i32) {
    %c0_i32 = arith.constant 0 : i32
    %c0_i32_0 = arith.constant 0 : i32
    %c0_i32_1 = arith.constant 0 : i32
    return %arg0, %c0_i32, %c0_i32_0 : i32, i32, i32
  }
  func.func @transform_6(%arg0: i32) -> (i32, i32, i32) {
    %c0_i32 = arith.constant 0 : i32
    %c0_i32_0 = arith.constant 0 : i32
    %c0_i32_1 = arith.constant 0 : i32
    return %arg0, %c0_i32, %c0_i32_0 : i32, i32, i32
  }
}

</mosaic_0001>

<llo_original>
// kernel: tpu_custom_call.1
$region0: #{tpu_custom_call.1}
  #allocation0 [shape = 'u32[]', space=smem, size = 0x4, offset = 0x4, fixed_abs, tag = 'smem constant byte address 0x4 - core index']
  #allocation1 [shape = 'u32[144,128]{1,0:T(1,128)}', space=vmem, size = 0x12000, scoped, tag = 'internal scratch']
  %s0 = inlined_call_operand.hbm [shape: f32[64,256], index: 0, kind: input, shape index: {}]
  %s1 = inlined_call_operand.vmem [shape: f32[4,3,64], index: 1, kind: input, shape index: {}]
  %s2 = inlined_call_operand.vmem [shape: f32[4,2,256], index: 2, kind: input, shape index: {}]
  %s3 = inlined_call_operand.hbm [shape: bf16[4,32,64], index: 3, kind: input, shape index: {}]
  %s4 = inlined_call_operand.hbm [shape: bf16[4,32,64], index: 4, kind: input, shape index: {}]
  %s5 = inlined_call_operand.vmem [shape: f32[4,3,256], index: 5, kind: output, shape index: {0}]
  %s6 = inlined_call_operand.vmem [shape: f32[2,1,1], index: 6, kind: output, shape index: {1}]
  %7 = xla_tuple %s5, %s6
  %s8 = sld [smem:[#allocation0]]
  $region73: #{tpu_custom_call.1} parent=0
    _
  %s10 = ssub.s32 1, %s8
  %s11 = scalar_select 0, %s10, %s8
  $region1: #{tpu_custom_call.1} parent=0
    #allocation2 [shape = 'u8[65536]{0}', space=vmem, size = 0x10000, scoped, tag = 'input window, operand 0, single buffered']
    #allocation3 [shape = 's32[2]{0}', space=sflag, size = 0x8, scoped, tag = 'scoped memory for tpu_custom_call.1']
    #allocation4 [shape = 'u8[32768]{0}', space=vmem, size = 0x8000, scoped, tag = 'input window, operand 3']
    #allocation5 [shape = 's32[2]{0}', space=sflag, size = 0x8, scoped, tag = 'scoped memory for tpu_custom_call.1']
    #allocation6 [shape = 'u8[32768]{0}', space=vmem, size = 0x8000, scoped, tag = 'input window, operand 4']
    %12 = vsyncpa [#allocation3], 0
    %13 = vsyncpa [#allocation5], 0
    %s14 = scalar_lea.sflag [#allocation5], 1
    %15 = vsyncpa %s14, 0
    loop: start=0, step=1, limit=4
    $region2: #{tpu_custom_call.1} parent=1 // loop_pre_header
      _
    $region3: #{tpu_custom_call.1} parent=1 // loop_header
      %s17 = sphi 0, %s21
      %p18 = scmp.ge.s32.totalorder %s17, 4
      %s25 = sphi 0, %s25
      %s27 = sphi 0, %s25
      %s28 = sphi 0, %s27
      %s42 = sphi 0, %s28
      %s48 = sphi 0, %s50
      %s51 = sphi 0, %s48
      %s52 = sphi 0, %s51
      %s68 = sphi 0, %s52
      %s74 = sphi 0, %s76
      %s77 = sphi 0, %s74
      %s78 = sphi 0, %s77
      %s94 = sphi 0, %s78
      %s100 = sphi 0, %s102
      %s103 = sphi 0, %s100
      %s104 = sphi 0, %s103
      %s120 = sphi 0, %s104
      %s126 = sphi 0, %s128
      %s129 = sphi 0, %s126
      %s130 = sphi 0, %s129
      %s146 = sphi 0, %s130
      %s152 = sphi 0, %s154
      %s155 = sphi 0, %s152
      %s156 = sphi 0, %s155
      %s172 = sphi 0, %s156
      %s178 = sphi 0, %s180
      %s181 = sphi 0, %s178
      %s182 = sphi 0, %s181
      %s198 = sphi 0, %s182
    $region4: #{tpu_custom_call.1} parent=1 // loop_header_branch
      %20 = sbr.rel (%p18) target = $region8
    $region5: #{tpu_custom_call.1} parent=1 // loop_body
      %s22 = ssub.s32 %s17, 1
      %s23 = ssub.s32 %s17, 2
      %s24 = sadd.s32 %s17, 1
      %s26 = sadd.s32 %s25, 1
      %p29 = scmp.eq.s32.totalorder %s17, 1
      %p30 = scmp.ne.s32.totalorder %s25, %s27
      %p31 = scmp.eq.s32.totalorder %s17, 0
      %p32 = por %p30, %p31
      %p33 = scmp.ne.s32.totalorder %s25, %s27
      %p34 = scmp.eq.s32.totalorder %s22, 1
      %p35 = por %p33, %p34
      %p36 = scmp.ne.s32.totalorder %s27, %s28
      %p37 = scmp.eq.s32.totalorder %s22, 0
      %p38 = por %p36, %p37
      %p39 = scmp.ne.s32.totalorder %s27, %s28
      %p40 = scmp.eq.s32.totalorder %s23, 1
      %p41 = por %p39, %p40
      %p43 = scmp.ne.s32.totalorder %s28, %s42
      %p44 = scmp.eq.s32.totalorder %s23, 0
      %p45 = por %p43, %p44
      %s46 = ssub.s32 %s17, %s24
      %p47 = scmp.eq.s32.totalorder %s46, 0
      %s49 = sadd.s32 %s48, 1
      %s50 = scalar_select %p47, %s48, %s49
      %p53 = pneg %p47
      %p54 = scmp.eq.s32.totalorder %s17, 1
      %p55 = por %p53, %p54
      %p56 = scmp.ne.s32.totalorder %s48, %s51
      %p57 = scmp.eq.s32.totalorder %s17, 0
      %p58 = por %p56, %p57
      %p59 = scmp.ne.s32.totalorder %s48, %s51
      %p60 = scmp.eq.s32.totalorder %s22, 1
      %p61 = por %p59, %p60
      %p62 = scmp.ne.s32.totalorder %s51, %s52
      %p63 = scmp.eq.s32.totalorder %s22, 0
      %p64 = por %p62, %p63
      %p65 = scmp.ne.s32.totalorder %s51, %s52
      %p66 = scmp.eq.s32.totalorder %s23, 1
      %p67 = por %p65, %p66
      %p69 = scmp.ne.s32.totalorder %s52, %s68
      %p70 = scmp.eq.s32.totalorder %s23, 0
      %p71 = por %p69, %p70
      %s72 = ssub.s32 %s17, %s24
      %p73 = scmp.eq.s32.totalorder %s72, 0
      %s75 = sadd.s32 %s74, 1
      %s76 = scalar_select %p73, %s74, %s75
      %p79 = pneg %p73
      %p80 = scmp.eq.s32.totalorder %s17, 1
      %p81 = por %p79, %p80
      %p82 = scmp.ne.s32.totalorder %s74, %s77
      %p83 = scmp.eq.s32.totalorder %s17, 0
      %p84 = por %p82, %p83
      %p85 = scmp.ne.s32.totalorder %s74, %s77
      %p86 = scmp.eq.s32.totalorder %s22, 1
      %p87 = por %p85, %p86
      %p88 = scmp.ne.s32.totalorder %s77, %s78
      %p89 = scmp.eq.s32.totalorder %s22, 0
      %p90 = por %p88, %p89
      %p91 = scmp.ne.s32.totalorder %s77, %s78
      %p92 = scmp.eq.s32.totalorder %s23, 1
      %p93 = por %p91, %p92
      %p95 = scmp.ne.s32.totalorder %s78, %s94
      %p96 = scmp.eq.s32.totalorder %s23, 0
      %p97 = por %p95, %p96
      %s98 = ssub.s32 %s17, %s24
      %p99 = scmp.eq.s32.totalorder %s98, 0
      %s101 = sadd.s32 %s100, 1
      %s102 = scalar_select %p99, %s100, %s101
      %p105 = pneg %p99
      %p106 = scmp.eq.s32.totalorder %s17, 1
      %p107 = por %p105, %p106
      %p108 = scmp.ne.s32.totalorder %s100, %s103
      %p109 = scmp.eq.s32.totalorder %s17, 0
      %p110 = por %p108, %p109
      %p111 = scmp.ne.s32.totalorder %s100, %s103
      %p112 = scmp.eq.s32.totalorder %s22, 1
      %p113 = por %p111, %p112
      %p114 = scmp.ne.s32.totalorder %s103, %s104
      %p115 = scmp.eq.s32.totalorder %s22, 0
      %p116 = por %p114, %p115
      %p117 = scmp.ne.s32.totalorder %s103, %s104
      %p118 = scmp.eq.s32.totalorder %s23, 1
      %p119 = por %p117, %p118
      %p121 = scmp.ne.s32.totalorder %s104, %s120
      %p122 = scmp.eq.s32.totalorder %s23, 0
      %p123 = por %p121, %p122
      %s124 = ssub.s32 %s17, %s24
      %p125 = scmp.eq.s32.totalorder %s124, 0
      %s127 = sadd.s32 %s126, 1
      %s128 = scalar_select %p125, %s126, %s127
      %p131 = pneg %p125
      %p132 = scmp.eq.s32.totalorder %s17, 1
      %p133 = por %p131, %p132
      %p134 = scmp.ne.s32.totalorder %s126, %s129
      %p135 = scmp.eq.s32.totalorder %s17, 0
      %p136 = por %p134, %p135
      %p137 = scmp.ne.s32.totalorder %s126, %s129
      %p138 = scmp.eq.s32.totalorder %s22, 1
      %p139 = por %p137, %p138
      %p140 = scmp.ne.s32.totalorder %s129, %s130
      %p141 = scmp.eq.s32.totalorder %s22, 0
      %p142 = por %p140, %p141
      %p143 = scmp.ne.s32.totalorder %s129, %s130
      %p144 = scmp.eq.s32.totalorder %s23, 1
      %p145 = por %p143, %p144
      %p147 = scmp.ne.s32.totalorder %s130, %s146
      %p148 = scmp.eq.s32.totalorder %s23, 0
      %p149 = por %p147, %p148
      %s150 = ssub.s32 %s17, %s24
      %p151 = scmp.eq.s32.totalorder %s150, 0
      %s153 = sadd.s32 %s152, 1
      %s154 = scalar_select %p151, %s152, %s153
      %p157 = pneg %p151
      %p158 = scmp.eq.s32.totalorder %s17, 1
      %p159 = por %p157, %p158
      %p160 = scmp.ne.s32.totalorder %s152, %s155
      %p161 = scmp.eq.s32.totalorder %s17, 0
      %p162 = por %p160, %p161
      %p163 = scmp.ne.s32.totalorder %s152, %s155
      %p164 = scmp.eq.s32.totalorder %s22, 1
      %p165 = por %p163, %p164
      %p166 = scmp.ne.s32.totalorder %s155, %s156
      %p167 = scmp.eq.s32.totalorder %s22, 0
      %p168 = por %p166, %p167
      %p169 = scmp.ne.s32.totalorder %s155, %s156
      %p170 = scmp.eq.s32.totalorder %s23, 1
      %p171 = por %p169, %p170
      %p173 = scmp.ne.s32.totalorder %s156, %s172
      %p174 = scmp.eq.s32.totalorder %s23, 0
      %p175 = por %p173, %p174
      %s176 = ssub.s32 %s17, %s24
      %p177 = scmp.eq.s32.totalorder %s176, 0
      %s179 = sadd.s32 %s178, 1
      %s180 = scalar_select %p177, %s178, %s179
      %p183 = pneg %p177
      %p184 = scmp.eq.s32.totalorder %s17, 1
      %p185 = por %p183, %p184
      %p186 = scmp.ne.s32.totalorder %s178, %s181
      %p187 = scmp.eq.s32.totalorder %s17, 0
      %p188 = por %p186, %p187
      %p189 = scmp.ne.s32.totalorder %s178, %s181
      %p190 = scmp.eq.s32.totalorder %s22, 1
      %p191 = por %p189, %p190
      %p192 = scmp.ne.s32.totalorder %s181, %s182
      %p193 = scmp.eq.s32.totalorder %s22, 0
      %p194 = por %p192, %p193
      %p195 = scmp.ne.s32.totalorder %s181, %s182
      %p196 = scmp.eq.s32.totalorder %s23, 1
      %p197 = por %p195, %p196
      %p199 = scmp.ne.s32.totalorder %s182, %s198
      %p200 = scmp.eq.s32.totalorder %s23, 0
      %p201 = por %p199, %p200
      %p202 = scmp.le.s32.totalorder 1, %s17
      %p203 = scmp.lt.s32.totalorder %s17, 3
      %p204 = pnand %p202, %p203
      %p205 = pneg %p204
      // Predicated region
      $region9: #{tpu_custom_call.1} parent=5 // pred_check
        _
      $region10: #{tpu_custom_call.1} parent=5 // pred_check_branch
        %207 = sbr.rel (%p204) target = $region12
      $region11: #{tpu_custom_call.1} parent=5 // pred_region
        %s208 = ssub.s32 %s17, 1
        // Predicated region
        $region13: #{tpu_custom_call.1} parent=11 // pred_check
          %p209 = pneg %p38
        $region14: #{tpu_custom_call.1} parent=11 // pred_check_branch
          %211 = sbr.rel (%p209) target = $region16
        $region15: #{tpu_custom_call.1} parent=11 // pred_region
          %s213 = ssub.s32 2048, 2048
          %214 = vsyncadd [#allocation3], %s213
          %s215 = sshll.u32 [#allocation2], 4
          %s216 = int_to_ptr.vmem [resolvable:$true] %s215
          %221 = dma.hbm_to_vmem [thread:$0]  %s0, 2048, %s216, [#allocation3], 256, 256, 16
        $region16: #{tpu_custom_call.1} parent=11 // pred_fallthru
          _
      $region12: #{tpu_custom_call.1} parent=5 // pred_fallthru
        _
      %p222 = scmp.lt.s32.totalorder %s17, 2
      // Predicated region
      $region17: #{tpu_custom_call.1} parent=5 // pred_check
        %p223 = pneg %p222
      $region18: #{tpu_custom_call.1} parent=5 // pred_check_branch
        %225 = sbr.rel (%p223) target = $region20
      $region19: #{tpu_custom_call.1} parent=5 // pred_region
        // Predicated region
        $region21: #{tpu_custom_call.1} parent=19 // pred_check
          %p226 = pneg %p58
        $region22: #{tpu_custom_call.1} parent=19 // pred_check_branch
          %228 = sbr.rel (%p226) target = $region24
        $region23: #{tpu_custom_call.1} parent=19 // pred_region
          %s229 = smul.u32 2, %s17
          %p230 = scmp.lt.s32.totalorder %s229, 3
          %s231 = scalar_select %p230, %s229, 3
          %s232 = smul.addr %s231, 4
          %s233 = scalar_lea.vmem %s1, %s232
          %s234 = smul.u32 2, %s17
        $region24: #{tpu_custom_call.1} parent=19 // pred_fallthru
          _
        // Predicated region
        $region25: #{tpu_custom_call.1} parent=19 // pred_check
          %p235 = pneg %p84
        $region26: #{tpu_custom_call.1} parent=19 // pred_check_branch
          %237 = sbr.rel (%p235) target = $region28
        $region27: #{tpu_custom_call.1} parent=19 // pred_region
          %s238 = smul.u32 2, %s17
          %p239 = scmp.lt.s32.totalorder %s238, 3
          %s240 = scalar_select %p239, %s238, 3
          %s241 = smul.addr %s240, 2
          %s242 = smul.addr %s241, 2
          %s243 = scalar_lea.vmem %s2, %s242
          %s244 = smul.u32 2, %s17
        $region28: #{tpu_custom_call.1} parent=19 // pred_fallthru
          _
        // Predicated region
        $region29: #{tpu_custom_call.1} parent=19 // pred_check
          %p245 = pneg %p110
        $region30: #{tpu_custom_call.1} parent=19 // pred_check_branch
          %247 = sbr.rel (%p245) target = $region32
        $region31: #{tpu_custom_call.1} parent=19 // pred_region
          %s248 = sand.u32 %s17, 1
          %s249 = scalar_lea.sflag [#allocation5], %s248
          %s250 = sand.u32 %s100, 1
          %s251 = smul.addr %s250, 32
          %s252 = scalar_lea.vmem [#allocation4], %s251
          %s253 = smul.u32 2, %s17
          %s255 = ssub.s32 512, 512
          %256 = vsyncadd %s249, %s255
          %s257 = smul.addr %s253, 4
          %s258 = smul.addr %s257, 64
          %s259 = scalar_lea.hbm %s3, %s258
          %s260 = sshll.u32 %s252, 4
          %s261 = int_to_ptr.vmem [resolvable:$true] %s260
          %266 = dma.hbm_to_vmem [thread:$0]  %s259, 512, %s261, %s249, 64, 64, 4
        $region32: #{tpu_custom_call.1} parent=19 // pred_fallthru
          _
        // Predicated region
        $region33: #{tpu_custom_call.1} parent=19 // pred_check
          %p267 = pneg %p136
        $region34: #{tpu_custom_call.1} parent=19 // pred_check_branch
          %269 = sbr.rel (%p267) target = $region36
        $region35: #{tpu_custom_call.1} parent=19 // pred_region
          %s270 = sand.u32 %s17, 1
          %s271 = scalar_lea.sflag [#allocation5], %s270
          %s272 = sand.u32 %s126, 1
          %s273 = smul.addr %s272, 32
          %s274 = scalar_lea.vmem [#allocation6], %s273
          %s275 = smul.u32 2, %s17
          %s277 = ssub.s32 512, 512
          %278 = vsyncadd %s271, %s277
          %s279 = smul.addr %s275, 4
          %s280 = smul.addr %s279, 64
          %s281 = scalar_lea.hbm %s4, %s280
          %s282 = sshll.u32 %s274, 4
          %s283 = int_to_ptr.vmem [resolvable:$true] %s282
          %288 = dma.hbm_to_vmem [thread:$0]  %s281, 512, %s283, %s271, 64, 64, 4
        $region36: #{tpu_custom_call.1} parent=19 // pred_fallthru
          _
      $region20: #{tpu_custom_call.1} parent=5 // pred_fallthru
        _
      %p289 = scmp.le.s32.totalorder 1, %s17
      %p290 = scmp.lt.s32.totalorder %s17, 3
      %p291 = pnand %p289, %p290
      %p292 = pneg %p291
      // Predicated region
      $region37: #{tpu_custom_call.1} parent=5 // pred_check
        _
      $region38: #{tpu_custom_call.1} parent=5 // pred_check_branch
        %294 = sbr.rel (%p291) target = $region40
      $region39: #{tpu_custom_call.1} parent=5 // pred_region
        %s295 = ssub.s32 %s17, 1
        // Predicated region
        $region41: #{tpu_custom_call.1} parent=39 // pred_check
          %p296 = pneg %p38
        $region42: #{tpu_custom_call.1} parent=39 // pred_check_branch
          %298 = sbr.rel (%p296) target = $region44
        $region43: #{tpu_custom_call.1} parent=39 // pred_region
          %299 = dma.done [#allocation3], 2048
        $region44: #{tpu_custom_call.1} parent=39 // pred_fallthru
          _
        %s300 = sand.u32 %s22, 1
        %s301 = scalar_lea.sflag [#allocation5], %s300
        %s302 = sand.u32 %s103, 1
        %s303 = smul.addr %s302, 32
        %s304 = scalar_lea.vmem [#allocation4], %s303
        // Predicated region
        $region45: #{tpu_custom_call.1} parent=39 // pred_check
          %p305 = pneg %p116
        $region46: #{tpu_custom_call.1} parent=39 // pred_check_branch
          %307 = sbr.rel (%p305) target = $region48
        $region47: #{tpu_custom_call.1} parent=39 // pred_region
          %308 = dma.done %s301, 512
        $region48: #{tpu_custom_call.1} parent=39 // pred_fallthru
          _
        %s309 = sand.u32 %s22, 1
        %s310 = scalar_lea.sflag [#allocation5], %s309
        %s311 = sand.u32 %s129, 1
        %s312 = smul.addr %s311, 32
        %s313 = scalar_lea.vmem [#allocation6], %s312
        // Predicated region
        $region49: #{tpu_custom_call.1} parent=39 // pred_check
          %p314 = pneg %p142
        $region50: #{tpu_custom_call.1} parent=39 // pred_check_branch
          %316 = sbr.rel (%p314) target = $region52
        $region51: #{tpu_custom_call.1} parent=39 // pred_region
          %317 = dma.done %s310, 512
        $region52: #{tpu_custom_call.1} parent=39 // pred_fallthru
          _
        %p318 = pneg %p38
        %p319 = pneg %p35
        %s320 = smul.u32 2, %s22
        %p321 = scmp.lt.s32.totalorder %s320, 3
        %s322 = scalar_select %p321, %s320, 3
        %s323 = smul.addr %s322, 4
        %s324 = scalar_lea.vmem %s1, %s323
        %p325 = pneg %p64
        %p326 = pneg %p61
        %s327 = smul.u32 2, %s22
        %p328 = scmp.lt.s32.totalorder %s327, 3
        %s329 = scalar_select %p328, %s327, 3
        %s330 = smul.addr %s329, 2
        %s331 = smul.addr %s330, 2
        %s332 = scalar_lea.vmem %s2, %s331
        %p333 = pneg %p90
        %p334 = pneg %p87
        %s335 = sand.u32 %s22, 1
        %s336 = scalar_lea.sflag [#allocation5], %s335
        %s337 = sand.u32 %s103, 1
        %s338 = smul.addr %s337, 32
        %s339 = scalar_lea.vmem [#allocation4], %s338
        %p340 = pneg %p116
        %p341 = pneg %p113
        %s342 = sand.u32 %s22, 1
        %s343 = scalar_lea.sflag [#allocation5], %s342
        %s344 = sand.u32 %s129, 1
        %s345 = smul.addr %s344, 32
        %s346 = scalar_lea.vmem [#allocation6], %s345
        %p347 = pneg %p142
        %p348 = pneg %p139
        %p349 = pneg %p168
        %p350 = pneg %p165
        %s351 = smul.u32 2, %s22
        %p352 = scmp.lt.s32.totalorder %s351, 3
        %s353 = scalar_select %p352, %s351, 3
        %s354 = smul.addr %s353, 2
        %s355 = smul.addr %s354, 4
        %s356 = scalar_lea.vmem %s5, %s355
        %p357 = pneg %p194
        %p358 = pneg %p191
        %p359 = scmp.lt.s32.totalorder %s22, 1
        %s360 = scalar_select %p359, %s22, 1
        %s361 = scalar_lea.vmem %s6, %s360
        %s362 = smul.u32 2, %s22
        %p363 = scmp.lt.s32.totalorder %s362, 3
        %s364 = scalar_select %p363, %s362, 3
        %s365 = smul.addr %s364, 4
        %s366 = scalar_lea.vmem %s1, %s365
        %s367 = smul.u32 2, %s22
        %s368 = smul.u32 2, %s22
        %p369 = scmp.lt.s32.totalorder %s368, 3
        %s370 = scalar_select %p369, %s368, 3
        %s371 = smul.addr %s370, 2
        %s372 = smul.addr %s371, 2
        %s373 = scalar_lea.vmem %s2, %s372
        %s374 = smul.u32 2, %s22
        %s375 = smul.u32 2, %s22
        %s376 = smul.u32 2, %s22
        %s377 = smul.u32 2, %s22
        %p378 = scmp.lt.s32.totalorder %s377, 3
        %s379 = scalar_select %p378, %s377, 3
        %s380 = smul.addr %s379, 2
        %s381 = smul.addr %s380, 4
        %s382 = scalar_lea.vmem %s5, %s381
        %s383 = smul.u32 2, %s22
        %p384 = scmp.lt.s32.totalorder %s22, 1
        %s385 = scalar_select %p384, %s22, 1
        %s386 = scalar_lea.vmem %s6, %s385
        %v388 = vld [vmem:[#allocation2] sm:$0xff]
        %v389 = vld [vmem:[#allocation2 + $0x8] sm:$0xff]
        %v390 = vld [vmem:[#allocation2 + $0x10] sm:$0xff]
        %v391 = vld [vmem:[#allocation2 + $0x18] sm:$0xff]
        %v392 = vld [vmem:[#allocation2 + $0x20] sm:$0xff]
        %v393 = vld [vmem:[#allocation2 + $0x28] sm:$0xff]
        %v394 = vld [vmem:[#allocation2 + $0x30] sm:$0xff]
        %v395 = vld [vmem:[#allocation2 + $0x38] sm:$0xff]
        %v396 = vld [vmem:[#allocation2 + $0x40] sm:$0xff]
        %v397 = vld [vmem:[#allocation2 + $0x48] sm:$0xff]
        %v398 = vld [vmem:[#allocation2 + $0x50] sm:$0xff]
        %v399 = vld [vmem:[#allocation2 + $0x58] sm:$0xff]
        %v400 = vld [vmem:[#allocation2 + $0x60] sm:$0xff]
        %v401 = vld [vmem:[#allocation2 + $0x68] sm:$0xff]
        %v402 = vld [vmem:[#allocation2 + $0x70] sm:$0xff]
        %v403 = vld [vmem:[#allocation2 + $0x78] sm:$0xff]
        %v404 = vld [vmem:[%s304] sm:$0xf]
        %v405 = vld [vmem:[%s304 + $0x4] sm:$0xf]
        %v406 = vld [vmem:[%s304 + $0x8] sm:$0xf]
        %v407 = vld [vmem:[%s304 + $0xc] sm:$0xf]
        %v408 = vld [vmem:[%s313] sm:$0xf]
        %v409 = vld [vmem:[%s313 + $0x4] sm:$0xf]
        %v410 = vld [vmem:[%s313 + $0x8] sm:$0xf]
        %v411 = vld [vmem:[%s313 + $0xc] sm:$0xf]
        %v412 = vld [vmem:[%s366] sm:$0x7]
        %v413 = vpack.c.bf16 %v412, %v412
        %v418 = vunpack.c.l.b16 %v404
        %v419 = vunpack.c.l.b16 %v405
        %v420 = vunpack.c.l.b16 %v406
        %v421 = vunpack.c.l.b16 %v407
        %v422 = vpack.c.b16 %v419, %v418
        %v423 = vpack.c.b16 %v421, %v420
        %vm424 = vcmask 523264
        %v426 = vsel %vm424, %v413, 0
        %v429 = vsel %vm424, %v422, 0
        %v432 = vsel %vm424, %v423, 0
        %434 = vmatprep.subr.bf16.mxu0 0
        %435 = vmatpush1.bf16.xpose.msra.mxu0 %v429
        %436 = vmatprep.subr.bf16.mxu0 0
        %437 = vmatpush1.bf16.xpose.msra.mxu0 %v432
        %438 = vmatprep.subr.bf16.mxu0 0
        %439 = vmatpush1.bf16.xpose.msra.mxu0 0
        %440 = vmatprep.subr.bf16.mxu0 0
        %441 = vmatpush1.bf16.xpose.msra.mxu0 0
        %442 = vmatprep.subr.bf16.mxu0 0
        %443 = vmatpush1.bf16.xpose.msra.mxu0 0
        %444 = vmatprep.subr.bf16.mxu0 0
        %445 = vmatpush1.bf16.xpose.msra.mxu0 0
        %446 = vmatprep.subr.bf16.mxu0 0
        %447 = vmatpush1.bf16.xpose.msra.mxu0 0
        %448 = vmatprep.subr.bf16.mxu0 0
        %449 = vmatpush1.bf16.xpose.msra.mxu0 0
        %450 = vmatprep.subr.bf16.mxu0 0
        %451 = vmatpush1.bf16.xpose.msra.mxu0 0
        %452 = vmatprep.subr.bf16.mxu0 0
        %453 = vmatpush1.bf16.xpose.msra.mxu0 0
        %454 = vmatprep.subr.bf16.mxu0 0
        %455 = vmatpush1.bf16.xpose.msra.mxu0 0
        %456 = vmatprep.subr.bf16.mxu0 0
        %457 = vmatpush1.bf16.xpose.msra.mxu0 0
        %458 = vmatprep.subr.bf16.mxu0 0
        %459 = vmatpush1.bf16.xpose.msra.mxu0 0
        %460 = vmatprep.subr.bf16.mxu0 0
        %461 = vmatpush1.bf16.xpose.msra.mxu0 0
        %462 = vmatprep.subr.bf16.mxu0 0
        %463 = vmatpush1.bf16.xpose.msra.mxu0 0
        %464 = vmatprep.subr.bf16.mxu0 0
        %465 = vmatpush1.bf16.xpose.msra.mxu0 0
        %466 = vmatprep.mubr.bf16.mxu0 0
        %467 = vmatmul.mubr.bf16.gmra.mrb[0].mxu0 %v426
        %v468 = vpop.f32.mrb[0].mxu0
        %v469 = vadd.f32 0.0, %v468
        %v470 = vpop.f32.mrb[0].mxu0
        %v471 = vpop.f32.mrb[0].mxu0
        %v472 = vpop.f32.mrb[0].mxu0
        %473 = vdwg.mxu0
        %v474 = vpack.c.bf16 %v469, %v469
        %v475 = vunpack.c.l.bf16 %v474
        %v476 = vmul.f32 %v475, %v475
        %vm477 = vcmask 256000
        %v478 = vsel %vm477, %v476, 0.0
        %479 = vadd.xlane.f32.xlu0 %v478
        %v480 = vpop.xlane.xlu0 %479
        %v481 = vrsqrt.pop %v480
        %v482 = vmul.f32 %v480, %v481
        %vm483 = vcmp.eq.f32.partialorder %v480, inf
        %v484 = vsel %vm483, %v480, %v482
        %vm485 = vcmp.eq.f32.partialorder %v480, 0.0
        %v486 = vand.u32 %v480, 2147483648
        %v487 = vsel %vm485, %v486, %v484
        %v488 = vunpack.c.l.bf16 %v408
        %v489 = vunpack.c.l.bf16 %v409
        %v490 = vunpack.c.l.bf16 %v410
        %v491 = vunpack.c.l.bf16 %v411
        %v492 = vmul.f32 %v488, %v488
        %v493 = vmul.f32 %v489, %v489
        %v494 = vmul.f32 %v490, %v490
        %v495 = vmul.f32 %v491, %v491
        %v496 = vsel %vm424, %v492, 0.0
        %v497 = vsel %vm424, %v493, 0.0
        %v498 = vadd.f32 %v496, %v497
        %v499 = vsel %vm424, %v494, 0.0
        %v500 = vadd.f32 %v498, %v499
        %v501 = vsel %vm424, %v495, 0.0
        %v502 = vadd.f32 %v500, %v501
        %v503 = vrot.slane %v502, 4
        %v504 = vadd.f32 %v502, %v503
        %v505 = vrot.slane %v504, 2
        %v506 = vadd.f32 %v504, %v505
        %v507 = vrot.slane %v506, 1
        %v508 = vadd.f32 %v506, %v507
        %v509 = vrsqrt.pop %v508
        %v510 = vmul.f32 %v508, %v509
        %vm511 = vcmp.eq.f32.partialorder %v508, inf
        %v512 = vsel %vm511, %v508, %v510
        %vm513 = vcmp.eq.f32.partialorder %v508, 0.0
        %v514 = vand.u32 %v508, 2147483648
        %v515 = vsel %vm513, %v514, %v512
        %v520 = vunpack.c.l.b16 %v408
        %v521 = vunpack.c.l.b16 %v409
        %v522 = vunpack.c.l.b16 %v410
        %v523 = vunpack.c.l.b16 %v411
        %v524 = vpack.c.b16 %v521, %v520
        %v525 = vpack.c.b16 %v523, %v522
        %vm528 = vcmask 261120
        %v530 = vsel %vm528, %v474, 0
        %532 = vmatprep.subr.bf16.mxu0 0
        %533 = vmatpush1.bf16.msra.mxu0 %v524
        %534 = vmatprep.subr.bf16.mxu0 0
        %535 = vmatpush1.bf16.msra.mxu0 %v525
        %536 = vmatprep.subr.bf16.mxu0 0
        %537 = vmatpush1.bf16.msra.mxu0 0
        %538 = vmatprep.subr.bf16.mxu0 0
        %539 = vmatpush1.bf16.msra.mxu0 0
        %540 = vmatprep.subr.bf16.mxu0 0
        %541 = vmatpush1.bf16.msra.mxu0 0
        %542 = vmatprep.subr.bf16.mxu0 0
        %543 = vmatpush1.bf16.msra.mxu0 0
        %544 = vmatprep.subr.bf16.mxu0 0
        %545 = vmatpush1.bf16.msra.mxu0 0
        %546 = vmatprep.subr.bf16.mxu0 0
        %547 = vmatpush1.bf16.msra.mxu0 0
        %548 = vmatprep.subr.bf16.mxu0 0
        %549 = vmatpush1.bf16.msra.mxu0 0
        %550 = vmatprep.subr.bf16.mxu0 0
        %551 = vmatpush1.bf16.msra.mxu0 0
        %552 = vmatprep.subr.bf16.mxu0 0
        %553 = vmatpush1.bf16.msra.mxu0 0
        %554 = vmatprep.subr.bf16.mxu0 0
        %555 = vmatpush1.bf16.msra.mxu0 0
        %556 = vmatprep.subr.bf16.mxu0 0
        %557 = vmatpush1.bf16.msra.mxu0 0
        %558 = vmatprep.subr.bf16.mxu0 0
        %559 = vmatpush1.bf16.msra.mxu0 0
        %560 = vmatprep.subr.bf16.mxu0 0
        %561 = vmatpush1.bf16.msra.mxu0 0
        %562 = vmatprep.subr.bf16.mxu0 0
        %563 = vmatpush1.bf16.msra.mxu0 0
        %564 = vmatprep.mubr.bf16.mxu0 0
        %565 = vmatmul.mubr.bf16.gmra.mrb[0].mxu0 %v530
        %v566 = vpop.f32.mrb[0].mxu0
        %v567 = vadd.f32 0.0, %v566
        %v568 = vpop.f32.mrb[0].mxu0
        %v569 = vpop.f32.mrb[0].mxu0
        %v570 = vpop.f32.mrb[0].mxu0
        %571 = vdwg.mxu0
        %v572 = vmul.f32 %v487, %v515
        %v573 = vmax.f32 %v572, 1e-08
        %v574 = vrcp.pop %v573
        %v575 = vmul.f32 %v574, 20.0
        %v576 = vmul.f32 %v567, %v575
        %vm577 = vcmask 518144
        %v578 = vsel %vm577, %v576, -inf
        %v579 = vrot.slane %v578, 4
        %v580 = vmax.f32 %v578, %v579
        %v581 = vrot.slane %v580, 2
        %v582 = vmax.f32 %v580, %v581
        %v583 = vrot.slane %v582, 1
        %v584 = vmax.f32 %v582, %v583
        %vm585 = vcmp.eq.f32.partialorder %v576, %v584
        %v586 = vsel %vm585, 1, 0
        %v587 = vcvt.s32.f32 %v586
        %vm588 = vcmask 516096
        %v589 = vsel %vm588, %v587, 0.0
        %590 = vadd.xlane.f32.xlu0 %v589
        %v591 = vpop.xlane.xlu0 %590
        %v592 = vrot.slane %v591, 4
        %v593 = vadd.f32 %v591, %v592
        %v594 = vrot.slane %v593, 2
        %v595 = vadd.f32 %v593, %v594
        %v596 = vrot.slane %v595, 1
        %v597 = vadd.f32 %v595, %v596
        %s598 = vtos %v597
        %s599 = sadd.f32 %s598, 1e-05
        %v600 = vstv %s599
        %v601 = vrcp.pop %v600
        %s602 = vtos %v601
        %v603 = vstv %s602
        %v604 = vmul.f32 %v587, %v603
        %vm605 = vmxor %vm585, 1
        %v606 = vsel %vm605, 1, 0
        %v607 = vrot.slane %v606, 7
        %vm608 = vcmp.ne.s32.totalorder %v607, 0
        %vm609 = vmand %vm585, %vm608
        %v610 = vsel %vm609, 1, 0
        %v611 = vrot.slane %v610, 1
        %vm612 = vcmp.ne.s32.totalorder %v611, 0
        %vm613 = vmor %vm585, %vm612
        %v614 = vcvt.s32.f32 %v610
        %v616 = vrot.slane %v614, 1
        %v618 = vsel %vm588, %v616, 0.0
        %619 = vadd.xlane.f32.xlu0 %v618
        %v620 = vpop.xlane.xlu0 %619
        %v621 = vrot.slane %v620, 4
        %v622 = vadd.f32 %v620, %v621
        %v623 = vrot.slane %v622, 2
        %v624 = vadd.f32 %v622, %v623
        %v625 = vrot.slane %v624, 1
        %v626 = vadd.f32 %v624, %v625
        %s627 = vtos %v626
        %s628 = sadd.f32 %s627, 1e-05
        %v629 = vstv %s628
        %v630 = vrcp.pop %v629
        %s631 = vtos %v630
        %v632 = vstv %s631
        %v633 = vmul.f32 %v614, %v632
        %vm634 = vmxor %vm613, 1
        %v635 = vsel %vm634, 1, 0
        %v636 = vrot.slane %v635, 6
        %vm637 = vcmp.ne.s32.totalorder %v636, 0
        %vm638 = vmand %vm585, %vm637
        %v639 = vsel %vm638, 1, 0
        %v640 = vcvt.s32.f32 %v639
        %v642 = vrot.slane %v640, 2
        %v644 = vsel %vm588, %v642, 0.0
        %645 = vadd.xlane.f32.xlu0 %v644
        %v646 = vpop.xlane.xlu0 %645
        %v647 = vrot.slane %v646, 4
        %v648 = vadd.f32 %v646, %v647
        %v649 = vrot.slane %v648, 2
        %v650 = vadd.f32 %v648, %v649
        %v651 = vrot.slane %v650, 1
        %v652 = vadd.f32 %v650, %v651
        %s653 = vtos %v652
        %s654 = sadd.f32 %s653, 1e-05
        %v655 = vstv %s654
        %v656 = vrcp.pop %v655
        %s657 = vtos %v656
        %v658 = vstv %s657
        %v659 = vmul.f32 %v640, %v658
        %vm660 = vcmask 1040384
        %v661 = vsel %vm660, %v604, %v633
        %vm662 = vcmask 1041408
        %v663 = vsel %vm662, %v661, %v659
        %v664 = vpack.c.bf16 %v663, %v663
        %v666 = vsel %vm424, %v664, 0
        %v669 = vsel %vm424, %v524, 0
        %v672 = vsel %vm424, %v525, 0
        %674 = vmatprep.subr.bf16.mxu0 0
        %675 = vmatpush1.bf16.xpose.msra.mxu0 %v669
        %676 = vmatprep.subr.bf16.mxu0 0
        %677 = vmatpush1.bf16.xpose.msra.mxu0 %v672
        %678 = vmatprep.subr.bf16.mxu0 0
        %679 = vmatpush1.bf16.xpose.msra.mxu0 0
        %680 = vmatprep.subr.bf16.mxu0 0
        %681 = vmatpush1.bf16.xpose.msra.mxu0 0
        %682 = vmatprep.subr.bf16.mxu0 0
        %683 = vmatpush1.bf16.xpose.msra.mxu0 0
        %684 = vmatprep.subr.bf16.mxu0 0
        %685 = vmatpush1.bf16.xpose.msra.mxu0 0
        %686 = vmatprep.subr.bf16.mxu0 0
        %687 = vmatpush1.bf16.xpose.msra.mxu0 0
        %688 = vmatprep.subr.bf16.mxu0 0
        %689 = vmatpush1.bf16.xpose.msra.mxu0 0
        %690 = vmatprep.subr.bf16.mxu0 0
        %691 = vmatpush1.bf16.xpose.msra.mxu0 0
        %692 = vmatprep.subr.bf16.mxu0 0
        %693 = vmatpush1.bf16.xpose.msra.mxu0 0
        %694 = vmatprep.subr.bf16.mxu0 0
        %695 = vmatpush1.bf16.xpose.msra.mxu0 0
        %696 = vmatprep.subr.bf16.mxu0 0
        %697 = vmatpush1.bf16.xpose.msra.mxu0 0
        %698 = vmatprep.subr.bf16.mxu0 0
        %699 = vmatpush1.bf16.xpose.msra.mxu0 0
        %700 = vmatprep.subr.bf16.mxu0 0
        %701 = vmatpush1.bf16.xpose.msra.mxu0 0
        %702 = vmatprep.subr.bf16.mxu0 0
        %703 = vmatpush1.bf16.xpose.msra.mxu0 0
        %704 = vmatprep.subr.bf16.mxu0 0
        %705 = vmatpush1.bf16.xpose.msra.mxu0 0
        %706 = vmatprep.mubr.bf16.mxu0 0
        %707 = vmatmul.mubr.bf16.gmra.mrb[0].mxu0 %v666
        %v708 = vpop.f32.mrb[0].mxu0
        %v709 = vadd.f32 0.0, %v708
        %v710 = vpop.f32.mrb[0].mxu0
        %v711 = vpop.f32.mrb[0].mxu0
        %v712 = vpop.f32.mrb[0].mxu0
        %713 = vdwg.mxu0
        %v714 = vpack.c.bf16 %v709, %v709
        %v715 = vunpack.c.l.bf16 %v714
        %v716 = vmul.f32 %v715, %v715
        %v717 = vsel %vm477, %v716, 0.0
        %718 = vadd.xlane.f32.xlu0 %v717
        %v719 = vpop.xlane.xlu0 %718
        %v720 = vrsqrt.pop %v719
        %v721 = vmul.f32 %v719, %v720
        %vm722 = vcmp.eq.f32.partialorder %v719, inf
        %v723 = vsel %vm722, %v719, %v721
        %vm724 = vcmp.eq.f32.partialorder %v719, 0.0
        %v725 = vand.u32 %v719, 2147483648
        %v726 = vsel %vm724, %v725, %v723
        %v727 = vunpack.c.l.bf16 %v404
        %v728 = vunpack.c.l.bf16 %v405
        %v729 = vunpack.c.l.bf16 %v406
        %v730 = vunpack.c.l.bf16 %v407
        %v731 = vmul.f32 %v727, %v727
        %v732 = vmul.f32 %v728, %v728
        %v733 = vmul.f32 %v729, %v729
        %v734 = vmul.f32 %v730, %v730
        %v735 = vsel %vm424, %v731, 0.0
        %v736 = vsel %vm424, %v732, 0.0
        %v737 = vadd.f32 %v735, %v736
        %v738 = vsel %vm424, %v733, 0.0
        %v739 = vadd.f32 %v737, %v738
        %v740 = vsel %vm424, %v734, 0.0
        %v741 = vadd.f32 %v739, %v740
        %v742 = vrot.slane %v741, 4
        %v743 = vadd.f32 %v741, %v742
        %v744 = vrot.slane %v743, 2
        %v745 = vadd.f32 %v743, %v744
        %v746 = vrot.slane %v745, 1
        %v747 = vadd.f32 %v745, %v746
        %v748 = vrsqrt.pop %v747
        %v749 = vmul.f32 %v747, %v748
        %vm750 = vcmp.eq.f32.partialorder %v747, inf
        %v751 = vsel %vm750, %v747, %v749
        %vm752 = vcmp.eq.f32.partialorder %v747, 0.0
        %v753 = vand.u32 %v747, 2147483648
        %v754 = vsel %vm752, %v753, %v751
        %v758 = vsel %vm528, %v714, 0
        %760 = vmatprep.subr.bf16.mxu0 0
        %761 = vmatpush1.bf16.msra.mxu0 %v422
        %762 = vmatprep.subr.bf16.mxu0 0
        %763 = vmatpush1.bf16.msra.mxu0 %v423
        %764 = vmatprep.subr.bf16.mxu0 0
        %765 = vmatpush1.bf16.msra.mxu0 0
        %766 = vmatprep.subr.bf16.mxu0 0
        %767 = vmatpush1.bf16.msra.mxu0 0
        %768 = vmatprep.subr.bf16.mxu0 0
        %769 = vmatpush1.bf16.msra.mxu0 0
        %770 = vmatprep.subr.bf16.mxu0 0
        %771 = vmatpush1.bf16.msra.mxu0 0
        %772 = vmatprep.subr.bf16.mxu0 0
        %773 = vmatpush1.bf16.msra.mxu0 0
        %774 = vmatprep.subr.bf16.mxu0 0
        %775 = vmatpush1.bf16.msra.mxu0 0
        %776 = vmatprep.subr.bf16.mxu0 0
        %777 = vmatpush1.bf16.msra.mxu0 0
        %778 = vmatprep.subr.bf16.mxu0 0
        %779 = vmatpush1.bf16.msra.mxu0 0
        %780 = vmatprep.subr.bf16.mxu0 0
        %781 = vmatpush1.bf16.msra.mxu0 0
        %782 = vmatprep.subr.bf16.mxu0 0
        %783 = vmatpush1.bf16.msra.mxu0 0
        %784 = vmatprep.subr.bf16.mxu0 0
        %785 = vmatpush1.bf16.msra.mxu0 0
        %786 = vmatprep.subr.bf16.mxu0 0
        %787 = vmatpush1.bf16.msra.mxu0 0
        %788 = vmatprep.subr.bf16.mxu0 0
        %789 = vmatpush1.bf16.msra.mxu0 0
        %790 = vmatprep.subr.bf16.mxu0 0
        %791 = vmatpush1.bf16.msra.mxu0 0
        %792 = vmatprep.mubr.bf16.mxu0 0
        %793 = vmatmul.mubr.bf16.gmra.mrb[0].mxu0 %v758
        %v794 = vpop.f32.mrb[0].mxu0
        %v795 = vadd.f32 0.0, %v794
        %v796 = vpop.f32.mrb[0].mxu0
        %v797 = vpop.f32.mrb[0].mxu0
        %v798 = vpop.f32.mrb[0].mxu0
        %799 = vdwg.mxu0
        %v800 = vmul.f32 %v726, %v754
        %v801 = vmax.f32 %v800, 1e-08
        %v802 = vrcp.pop %v801
        %v803 = vmul.f32 %v802, 20.0
        %v804 = vmul.f32 %v795, %v803
        %v806 = vrot.slane %v804, 5
        %vm808 = vcmask 1042432
        %v809 = vsel %vm808, %v576, %v806
        %s810 = scalar_lea.vmem %s304, 16 [#allocation4]
        %v811 = vld [vmem:[%s810] sm:$0xf]
        %v812 = vld [vmem:[%s810 + $0x4] sm:$0xf]
        %v813 = vld [vmem:[%s810 + $0x8] sm:$0xf]
        %v814 = vld [vmem:[%s810 + $0xc] sm:$0xf]
        %s815 = scalar_lea.vmem %s313, 16 [#allocation6]
        %v816 = vld [vmem:[%s815] sm:$0xf]
        %v817 = vld [vmem:[%s815 + $0x4] sm:$0xf]
        %v818 = vld [vmem:[%s815 + $0x8] sm:$0xf]
        %v819 = vld [vmem:[%s815 + $0xc] sm:$0xf]
        %s820 = scalar_lea.vmem %s366, 4
        %v821 = vld [vmem:[%s820] sm:$0x7]
        %v822 = vpack.c.bf16 %v821, %v821
        %v827 = vunpack.c.l.b16 %v811
        %v828 = vunpack.c.l.b16 %v812
        %v829 = vunpack.c.l.b16 %v813
        %v830 = vunpack.c.l.b16 %v814
        %v831 = vpack.c.b16 %v828, %v827
        %v832 = vpack.c.b16 %v830, %v829
        %v834 = vsel %vm424, %v822, 0
        %v837 = vsel %vm424, %v831, 0
        %v840 = vsel %vm424, %v832, 0
        %842 = vmatprep.subr.bf16.mxu0 0
        %843 = vmatpush1.bf16.xpose.msra.mxu0 %v837
        %844 = vmatprep.subr.bf16.mxu0 0
        %845 = vmatpush1.bf16.xpose.msra.mxu0 %v840
        %846 = vmatprep.subr.bf16.mxu0 0
        %847 = vmatpush1.bf16.xpose.msra.mxu0 0
        %848 = vmatprep.subr.bf16.mxu0 0
        %849 = vmatpush1.bf16.xpose.msra.mxu0 0
        %850 = vmatprep.subr.bf16.mxu0 0
        %851 = vmatpush1.bf16.xpose.msra.mxu0 0
        %852 = vmatprep.subr.bf16.mxu0 0
        %853 = vmatpush1.bf16.xpose.msra.mxu0 0
        %854 = vmatprep.subr.bf16.mxu0 0
        %855 = vmatpush1.bf16.xpose.msra.mxu0 0
        %856 = vmatprep.subr.bf16.mxu0 0
        %857 = vmatpush1.bf16.xpose.msra.mxu0 0
        %858 = vmatprep.subr.bf16.mxu0 0
        %859 = vmatpush1.bf16.xpose.msra.mxu0 0
        %860 = vmatprep.subr.bf16.mxu0 0
        %861 = vmatpush1.bf16.xpose.msra.mxu0 0
        %862 = vmatprep.subr.bf16.mxu0 0
        %863 = vmatpush1.bf16.xpose.msra.mxu0 0
        %864 = vmatprep.subr.bf16.mxu0 0
        %865 = vmatpush1.bf16.xpose.msra.mxu0 0
        %866 = vmatprep.subr.bf16.mxu0 0
        %867 = vmatpush1.bf16.xpose.msra.mxu0 0
        %868 = vmatprep.subr.bf16.mxu0 0
        %869 = vmatpush1.bf16.xpose.msra.mxu0 0
        %870 = vmatprep.subr.bf16.mxu0 0
        %871 = vmatpush1.bf16.xpose.msra.mxu0 0
        %872 = vmatprep.subr.bf16.mxu0 0
        %873 = vmatpush1.bf16.xpose.msra.mxu0 0
        %874 = vmatprep.mubr.bf16.mxu0 0
        %875 = vmatmul.mubr.bf16.gmra.mrb[0].mxu0 %v834
        %v876 = vpop.f32.mrb[0].mxu0
        %v877 = vadd.f32 0.0, %v876
        %v878 = vpop.f32.mrb[0].mxu0
        %v879 = vpop.f32.mrb[0].mxu0
        %v880 = vpop.f32.mrb[0].mxu0
        %881 = vdwg.mxu0
        %v882 = vpack.c.bf16 %v877, %v877
        %v883 = vunpack.c.l.bf16 %v882
        %v884 = vmul.f32 %v883, %v883
        %v885 = vsel %vm477, %v884, 0.0
        %886 = vadd.xlane.f32.xlu0 %v885
        %v887 = vpop.xlane.xlu0 %886
        %v888 = vrsqrt.pop %v887
        %v889 = vmul.f32 %v887, %v888
        %vm890 = vcmp.eq.f32.partialorder %v887, inf
        %v891 = vsel %vm890, %v887, %v889
        %vm892 = vcmp.eq.f32.partialorder %v887, 0.0
        %v893 = vand.u32 %v887, 2147483648
        %v894 = vsel %vm892, %v893, %v891
        %v895 = vunpack.c.l.bf16 %v816
        %v896 = vunpack.c.l.bf16 %v817
        %v897 = vunpack.c.l.bf16 %v818
        %v898 = vunpack.c.l.bf16 %v819
        %v899 = vmul.f32 %v895, %v895
        %v900 = vmul.f32 %v896, %v896
        %v901 = vmul.f32 %v897, %v897
        %v902 = vmul.f32 %v898, %v898
        %v903 = vsel %vm424, %v899, 0.0
        %v904 = vsel %vm424, %v900, 0.0
        %v905 = vadd.f32 %v903, %v904
        %v906 = vsel %vm424, %v901, 0.0
        %v907 = vadd.f32 %v905, %v906
        %v908 = vsel %vm424, %v902, 0.0
        %v909 = vadd.f32 %v907, %v908
        %v910 = vrot.slane %v909, 4
        %v911 = vadd.f32 %v909, %v910
        %v912 = vrot.slane %v911, 2
        %v913 = vadd.f32 %v911, %v912
        %v914 = vrot.slane %v913, 1
        %v915 = vadd.f32 %v913, %v914
        %v916 = vrsqrt.pop %v915
        %v917 = vmul.f32 %v915, %v916
        %vm918 = vcmp.eq.f32.partialorder %v915, inf
        %v919 = vsel %vm918, %v915, %v917
        %vm920 = vcmp.eq.f32.partialorder %v915, 0.0
        %v921 = vand.u32 %v915, 2147483648
        %v922 = vsel %vm920, %v921, %v919
        %v927 = vunpack.c.l.b16 %v816
        %v928 = vunpack.c.l.b16 %v817
        %v929 = vunpack.c.l.b16 %v818
        %v930 = vunpack.c.l.b16 %v819
        %v931 = vpack.c.b16 %v928, %v927
        %v932 = vpack.c.b16 %v930, %v929
        %v936 = vsel %vm528, %v882, 0
        %938 = vmatprep.subr.bf16.mxu0 0
        %939 = vmatpush1.bf16.msra.mxu0 %v931
        %940 = vmatprep.subr.bf16.mxu0 0
        %941 = vmatpush1.bf16.msra.mxu0 %v932
        %942 = vmatprep.subr.bf16.mxu0 0
        %943 = vmatpush1.bf16.msra.mxu0 0
        %944 = vmatprep.subr.bf16.mxu0 0
        %945 = vmatpush1.bf16.msra.mxu0 0
        %946 = vmatprep.subr.bf16.mxu0 0
        %947 = vmatpush1.bf16.msra.mxu0 0
        %948 = vmatprep.subr.bf16.mxu0 0
        %949 = vmatpush1.bf16.msra.mxu0 0
        %950 = vmatprep.subr.bf16.mxu0 0
        %951 = vmatpush1.bf16.msra.mxu0 0
        %952 = vmatprep.subr.bf16.mxu0 0
        %953 = vmatpush1.bf16.msra.mxu0 0
        %954 = vmatprep.subr.bf16.mxu0 0
        %955 = vmatpush1.bf16.msra.mxu0 0
        %956 = vmatprep.subr.bf16.mxu0 0
        %957 = vmatpush1.bf16.msra.mxu0 0
        %958 = vmatprep.subr.bf16.mxu0 0
        %959 = vmatpush1.bf16.msra.mxu0 0
        %960 = vmatprep.subr.bf16.mxu0 0
        %961 = vmatpush1.bf16.msra.mxu0 0
        %962 = vmatprep.subr.bf16.mxu0 0
        %963 = vmatpush1.bf16.msra.mxu0 0
        %964 = vmatprep.subr.bf16.mxu0 0
        %965 = vmatpush1.bf16.msra.mxu0 0
        %966 = vmatprep.subr.bf16.mxu0 0
        %967 = vmatpush1.bf16.msra.mxu0 0
        %968 = vmatprep.subr.bf16.mxu0 0
        %969 = vmatpush1.bf16.msra.mxu0 0
        %970 = vmatprep.mubr.bf16.mxu0 0
        %971 = vmatmul.mubr.bf16.gmra.mrb[0].mxu0 %v936
        %v972 = vpop.f32.mrb[0].mxu0
        %v973 = vadd.f32 0.0, %v972
        %v974 = vpop.f32.mrb[0].mxu0
        %v975 = vpop.f32.mrb[0].mxu0
        %v976 = vpop.f32.mrb[0].mxu0
        %977 = vdwg.mxu0
        %v978 = vmul.f32 %v894, %v922
        %v979 = vmax.f32 %v978, 1e-08
        %v980 = vrcp.pop %v979
        %v981 = vmul.f32 %v980, 20.0
        %v982 = vmul.f32 %v973, %v981
        %v983 = vsel %vm577, %v982, -inf
        %v984 = vrot.slane %v983, 4
        %v985 = vmax.f32 %v983, %v984
        %v986 = vrot.slane %v985, 2
        %v987 = vmax.f32 %v985, %v986
        %v988 = vrot.slane %v987, 1
        %v989 = vmax.f32 %v987, %v988
        %vm990 = vcmp.eq.f32.partialorder %v982, %v989
        %v991 = vsel %vm990, 1, 0
        %v992 = vcvt.s32.f32 %v991
        %v993 = vsel %vm588, %v992, 0.0
        %994 = vadd.xlane.f32.xlu0 %v993
        %v995 = vpop.xlane.xlu0 %994
        %v996 = vrot.slane %v995, 4
        %v997 = vadd.f32 %v995, %v996
        %v998 = vrot.slane %v997, 2
        %v999 = vadd.f32 %v997, %v998
        %v1000 = vrot.slane %v999, 1
        %v1001 = vadd.f32 %v999, %v1000
        %s1002 = vtos %v1001
        %s1003 = sadd.f32 %s1002, 1e-05
        %v1004 = vstv %s1003
        %v1005 = vrcp.pop %v1004
        %s1006 = vtos %v1005
        %v1007 = vstv %s1006
        %v1008 = vmul.f32 %v992, %v1007
        %vm1009 = vmxor %vm990, 1
        %v1010 = vsel %vm1009, 1, 0
        %v1011 = vrot.slane %v1010, 7
        %vm1012 = vcmp.ne.s32.totalorder %v1011, 0
        %vm1013 = vmand %vm990, %vm1012
        %v1014 = vsel %vm1013, 1, 0
        %v1015 = vrot.slane %v1014, 1
        %vm1016 = vcmp.ne.s32.totalorder %v1015, 0
        %vm1017 = vmor %vm990, %vm1016
        %v1018 = vcvt.s32.f32 %v1014
        %v1020 = vrot.slane %v1018, 1
        %v1022 = vsel %vm588, %v1020, 0.0
        %1023 = vadd.xlane.f32.xlu0 %v1022
        %v1024 = vpop.xlane.xlu0 %1023
        %v1025 = vrot.slane %v1024, 4
        %v1026 = vadd.f32 %v1024, %v1025
        %v1027 = vrot.slane %v1026, 2
        %v1028 = vadd.f32 %v1026, %v1027
        %v1029 = vrot.slane %v1028, 1
        %v1030 = vadd.f32 %v1028, %v1029
        %s1031 = vtos %v1030
        %s1032 = sadd.f32 %s1031, 1e-05
        %v1033 = vstv %s1032
        %v1034 = vrcp.pop %v1033
        %s1035 = vtos %v1034
        %v1036 = vstv %s1035
        %v1037 = vmul.f32 %v1018, %v1036
        %vm1038 = vmxor %vm1017, 1
        %v1039 = vsel %vm1038, 1, 0
        %v1040 = vrot.slane %v1039, 6
        %vm1041 = vcmp.ne.s32.totalorder %v1040, 0
        %vm1042 = vmand %vm990, %vm1041
        %v1043 = vsel %vm1042, 1, 0
        %v1044 = vcvt.s32.f32 %v1043
        %v1046 = vrot.slane %v1044, 2
        %v1048 = vsel %vm588, %v1046, 0.0
        %1049 = vadd.xlane.f32.xlu0 %v1048
        %v1050 = vpop.xlane.xlu0 %1049
        %v1051 = vrot.slane %v1050, 4
        %v1052 = vadd.f32 %v1050, %v1051
        %v1053 = vrot.slane %v1052, 2
        %v1054 = vadd.f32 %v1052, %v1053
        %v1055 = vrot.slane %v1054, 1
        %v1056 = vadd.f32 %v1054, %v1055
        %s1057 = vtos %v1056
        %s1058 = sadd.f32 %s1057, 1e-05
        %v1059 = vstv %s1058
        %v1060 = vrcp.pop %v1059
        %s1061 = vtos %v1060
        %v1062 = vstv %s1061
        %v1063 = vmul.f32 %v1044, %v1062
        %v1064 = vsel %vm660, %v1008, %v1037
        %v1065 = vsel %vm662, %v1064, %v1063
        %v1066 = vpack.c.bf16 %v1065, %v1065
        %v1068 = vsel %vm424, %v1066, 0
        %v1071 = vsel %vm424, %v931, 0
        %v1074 = vsel %vm424, %v932, 0
        %1076 = vmatprep.subr.bf16.mxu0 0
        %1077 = vmatpush1.bf16.xpose.msra.mxu0 %v1071
        %1078 = vmatprep.subr.bf16.mxu0 0
        %1079 = vmatpush1.bf16.xpose.msra.mxu0 %v1074
        %1080 = vmatprep.subr.bf16.mxu0 0
        %1081 = vmatpush1.bf16.xpose.msra.mxu0 0
        %1082 = vmatprep.subr.bf16.mxu0 0
        %1083 = vmatpush1.bf16.xpose.msra.mxu0 0
        %1084 = vmatprep.subr.bf16.mxu0 0
        %1085 = vmatpush1.bf16.xpose.msra.mxu0 0
        %1086 = vmatprep.subr.bf16.mxu0 0
        %1087 = vmatpush1.bf16.xpose.msra.mxu0 0
        %1088 = vmatprep.subr.bf16.mxu0 0
        %1089 = vmatpush1.bf16.xpose.msra.mxu0 0
        %1090 = vmatprep.subr.bf16.mxu0 0
        %1091 = vmatpush1.bf16.xpose.msra.mxu0 0
        %1092 = vmatprep.subr.bf16.mxu0 0
        %1093 = vmatpush1.bf16.xpose.msra.mxu0 0
        %1094 = vmatprep.subr.bf16.mxu0 0
        %1095 = vmatpush1.bf16.xpose.msra.mxu0 0
        %1096 = vmatprep.subr.bf16.mxu0 0
        %1097 = vmatpush1.bf16.xpose.msra.mxu0 0
        %1098 = vmatprep.subr.bf16.mxu0 0
        %1099 = vmatpush1.bf16.xpose.msra.mxu0 0
        %1100 = vmatprep.subr.bf16.mxu0 0
        %1101 = vmatpush1.bf16.xpose.msra.mxu0 0
        %1102 = vmatprep.subr.bf16.mxu0 0
        %1103 = vmatpush1.bf16.xpose.msra.mxu0 0
        %1104 = vmatprep.subr.bf16.mxu0 0
        %1105 = vmatpush1.bf16.xpose.msra.mxu0 0
        %1106 = vmatprep.subr.bf16.mxu0 0
        %1107 = vmatpush1.bf16.xpose.msra.mxu0 0
        %1108 = vmatprep.mubr.bf16.mxu0 0
        %1109 = vmatmul.mubr.bf16.gmra.mrb[0].mxu0 %v1068
        %v1110 = vpop.f32.mrb[0].mxu0
        %v1111 = vadd.f32 0.0, %v1110
        %v1112 = vpop.f32.mrb[0].mxu0
        %v1113 = vpop.f32.mrb[0].mxu0
        %v1114 = vpop.f32.mrb[0].mxu0
        %1115 = vdwg.mxu0
        %v1116 = vpack.c.bf16 %v1111, %v1111
        %v1117 = vunpack.c.l.bf16 %v1116
        %v1118 = vmul.f32 %v1117, %v1117
        %v1119 = vsel %vm477, %v1118, 0.0
        %1120 = vadd.xlane.f32.xlu0 %v1119
        %v1121 = vpop.xlane.xlu0 %1120
        %v1122 = vrsqrt.pop %v1121
        %v1123 = vmul.f32 %v1121, %v1122
        %vm1124 = vcmp.eq.f32.partialorder %v1121, inf
        %v1125 = vsel %vm1124, %v1121, %v1123
        %vm1126 = vcmp.eq.f32.partialorder %v1121, 0.0
        %v1127 = vand.u32 %v1121, 2147483648
        %v1128 = vsel %vm1126, %v1127, %v1125
        %v1129 = vunpack.c.l.bf16 %v811
        %v1130 = vunpack.c.l.bf16 %v812
        %v1131 = vunpack.c.l.bf16 %v813
        %v1132 = vunpack.c.l.bf16 %v814
        %v1133 = vmul.f32 %v1129, %v1129
        %v1134 = vmul.f32 %v1130, %v1130
        %v1135 = vmul.f32 %v1131, %v1131
        %v1136 = vmul.f32 %v1132, %v1132
        %v1137 = vsel %vm424, %v1133, 0.0
        %v1138 = vsel %vm424, %v1134, 0.0
        %v1139 = vadd.f32 %v1137, %v1138
        %v1140 = vsel %vm424, %v1135, 0.0
        %v1141 = vadd.f32 %v1139, %v1140
        %v1142 = vsel %vm424, %v1136, 0.0
        %v1143 = vadd.f32 %v1141, %v1142
        %v1144 = vrot.slane %v1143, 4
        %v1145 = vadd.f32 %v1143, %v1144
        %v1146 = vrot.slane %v1145, 2
        %v1147 = vadd.f32 %v1145, %v1146
        %v1148 = vrot.slane %v1147, 1
        %v1149 = vadd.f32 %v1147, %v1148
        %v1150 = vrsqrt.pop %v1149
        %v1151 = vmul.f32 %v1149, %v1150
        %vm1152 = vcmp.eq.f32.partialorder %v1149, inf
        %v1153 = vsel %vm1152, %v1149, %v1151
        %vm1154 = vcmp.eq.f32.partialorder %v1149, 0.0
        %v1155 = vand.u32 %v1149, 2147483648
        %v1156 = vsel %vm1154, %v1155, %v1153
        %v1160 = vsel %vm528, %v1116, 0
        %1162 = vmatprep.subr.bf16.mxu0 0
        %1163 = vmatpush1.bf16.msra.mxu0 %v831
        %1164 = vmatprep.subr.bf16.mxu0 0
        %1165 = vmatpush1.bf16.msra.mxu0 %v832
        %1166 = vmatprep.subr.bf16.mxu0 0
        %1167 = vmatpush1.bf16.msra.mxu0 0
        %1168 = vmatprep.subr.bf16.mxu0 0
        %1169 = vmatpush1.bf16.msra.mxu0 0
        %1170 = vmatprep.subr.bf16.mxu0 0
        %1171 = vmatpush1.bf16.msra.mxu0 0
        %1172 = vmatprep.subr.bf16.mxu0 0
        %1173 = vmatpush1.bf16.msra.mxu0 0
        %1174 = vmatprep.subr.bf16.mxu0 0
        %1175 = vmatpush1.bf16.msra.mxu0 0
        %1176 = vmatprep.subr.bf16.mxu0 0
        %1177 = vmatpush1.bf16.msra.mxu0 0
        %1178 = vmatprep.subr.bf16.mxu0 0
        %1179 = vmatpush1.bf16.msra.mxu0 0
        %1180 = vmatprep.subr.bf16.mxu0 0
        %1181 = vmatpush1.bf16.msra.mxu0 0
        %1182 = vmatprep.subr.bf16.mxu0 0
        %1183 = vmatpush1.bf16.msra.mxu0 0
        %1184 = vmatprep.subr.bf16.mxu0 0
        %1185 = vmatpush1.bf16.msra.mxu0 0
        %1186 = vmatprep.subr.bf16.mxu0 0
        %1187 = vmatpush1.bf16.msra.mxu0 0
        %1188 = vmatprep.subr.bf16.mxu0 0
        %1189 = vmatpush1.bf16.msra.mxu0 0
        %1190 = vmatprep.subr.bf16.mxu0 0
        %1191 = vmatpush1.bf16.msra.mxu0 0
        %1192 = vmatprep.subr.bf16.mxu0 0
        %1193 = vmatpush1.bf16.msra.mxu0 0
        %1194 = vmatprep.mubr.bf16.mxu0 0
        %1195 = vmatmul.mubr.bf16.gmra.mrb[0].mxu0 %v1160
        %v1196 = vpop.f32.mrb[0].mxu0
        %v1197 = vadd.f32 0.0, %v1196
        %v1198 = vpop.f32.mrb[0].mxu0
        %v1199 = vpop.f32.mrb[0].mxu0
        %v1200 = vpop.f32.mrb[0].mxu0
        %1201 = vdwg.mxu0
        %v1202 = vmul.f32 %v1128, %v1156
        %v1203 = vmax.f32 %v1202, 1e-08
        %v1204 = vrcp.pop %v1203
        %v1205 = vmul.f32 %v1204, 20.0
        %v1206 = vmul.f32 %v1197, %v1205
        %v1208 = vrot.slane %v1206, 5
        %v1210 = vsel %vm808, %v982, %v1208
        %v1212 = vrot.slane %v1210, 2
        %vm1214 = vcmask 1045504
        %v1215 = vsel %vm1214, %v809, %v1212
        %v1217 = vsel %vm424, %v1215, 0
        %v1219 = vsel %vm424, %v1212, 0
        %1221 = vmatprep.subr.mxu0 %v389
        %1222 = vmatpush1.msra.mxu0 %v388
        %1223 = vmatprep.subr.mxu0 %v391
        %1224 = vmatpush1.msra.mxu0 %v390
        %1225 = vmatprep.subr.mxu0 %v393
        %1226 = vmatpush1.msra.mxu0 %v392
        %1227 = vmatprep.subr.mxu0 %v395
        %1228 = vmatpush1.msra.mxu0 %v394
        %1229 = vmatprep.subr.mxu0 %v397
        %1230 = vmatpush1.msra.mxu0 %v396
        %1231 = vmatprep.subr.mxu0 %v399
        %1232 = vmatpush1.msra.mxu0 %v398
        %1233 = vmatprep.subr.mxu0 %v401
        %1234 = vmatpush1.msra.mxu0 %v400
        %1235 = vmatprep.subr.mxu0 %v403
        %1236 = vmatpush1.msra.mxu0 %v402
        %1237 = vmatprep.subr.mxu0 0.0
        %1238 = vmatpush1.msra.mxu0 0.0
        %1239 = vmatprep.subr.mxu0 0.0
        %1240 = vmatpush1.msra.mxu0 0.0
        %1241 = vmatprep.subr.mxu0 0.0
        %1242 = vmatpush1.msra.mxu0 0.0
        %1243 = vmatprep.subr.mxu0 0.0
        %1244 = vmatpush1.msra.mxu0 0.0
        %1245 = vmatprep.subr.mxu0 0.0
        %1246 = vmatpush1.msra.mxu0 0.0
        %1247 = vmatprep.subr.mxu0 0.0
        %1248 = vmatpush1.msra.mxu0 0.0
        %1249 = vmatprep.subr.mxu0 0.0
        %1250 = vmatpush1.msra.mxu0 0.0
        %1251 = vmatprep.subr.mxu0 0.0
        %1252 = vmatpush1.msra.mxu0 0.0
        %1253 = vmatprep.subr.mxu0 0.0
        %1254 = vmatpush1.msra.mxu0 0.0
        %1255 = vmatprep.subr.mxu0 0.0
        %1256 = vmatpush1.msra.mxu0 0.0
        %1257 = vmatprep.subr.mxu0 0.0
        %1258 = vmatpush1.msra.mxu0 0.0
        %1259 = vmatprep.subr.mxu0 0.0
        %1260 = vmatpush1.msra.mxu0 0.0
        %1261 = vmatprep.subr.mxu0 0.0
        %1262 = vmatpush1.msra.mxu0 0.0
        %1263 = vmatprep.subr.mxu0 0.0
        %1264 = vmatpush1.msra.mxu0 0.0
        %1265 = vmatprep.subr.mxu0 0.0
        %1266 = vmatpush1.msra.mxu0 0.0
        %1267 = vmatprep.subr.mxu0 0.0
        %1268 = vmatpush1.msra.mxu0 0.0
        %1269 = vmatprep.subr.mxu0 0.0
        %1270 = vmatpush1.msra.mxu0 0.0
        %1271 = vmatprep.subr.mxu0 0.0
        %1272 = vmatpush1.msra.mxu0 0.0
        %1273 = vmatprep.subr.mxu0 0.0
        %1274 = vmatpush1.msra.mxu0 0.0
        %1275 = vmatprep.subr.mxu0 0.0
        %1276 = vmatpush1.msra.mxu0 0.0
        %1277 = vmatprep.subr.mxu0 0.0
        %1278 = vmatpush1.msra.mxu0 0.0
        %1279 = vmatprep.subr.mxu0 0.0
        %1280 = vmatpush1.msra.mxu0 0.0
        %1281 = vmatprep.subr.mxu0 0.0
        %1282 = vmatpush1.msra.mxu0 0.0
        %1283 = vmatprep.subr.mxu0 0.0
        %1284 = vmatpush1.msra.mxu0 0.0
        %1285 = vmatprep.mubr.f32.mxu0 0.0
        %1286 = vmatmul.mubr.f32.gmra.mrb[0].mxu0 %v1217
        %v1287 = vpop.f32.mrb[0].mxu0
        %v1288 = vadd.f32 0.0, %v1287
        %v1289 = vpop.f32.mrb[0].mxu0
        %v1290 = vadd.f32 0.0, %v1289
        %1291 = vmatprep.mubr.f32.mxu0 0.0
        %1292 = vmatmul.mubr.f32.gmra.mrb[0].mxu0 %v1219
        %v1293 = vpop.f32.mrb[0].mxu0
        %v1294 = vadd.f32 0.0, %v1293
        %v1295 = vpop.f32.mrb[0].mxu0
        %v1296 = vadd.f32 0.0, %v1295
        %1297 = vdwg.mxu0
        %v1300 = vcombine.low %v1288, %v1290
        %1302 = vst [vmem:[%s382] sm:$0x77] %v1300
        %v1305 = vcombine.high %v1288, %v1290
        %v1306 = vcombine.low %v1294, %v1296
        %vm1307 = vcmask 1045508
        %vm1308 = vmor %vm662, %vm1307
        %v1309 = vrot.slane %v1305, 6
        %v1310 = vrot.slane %v1309, 4
        %v1311 = vrot.slane %v1306, 6
        %v1312 = vsel %vm1308, %v1310, %v1311
        %s1314 = scalar_lea.vmem %s382, 8
        %1315 = vst [vmem:[%s1314] sm:$0x77] %v1312
        %v1316 = vld [vmem:[%s373] sm:$0xf]
        %vm1317 = vcmp.eq.f32.partialorder %v1316, 0.0
        %vm1318 = vcmp.eq.f32.partialorder %v1316, 1.0
        %vm1319 = vmor %vm1317, %vm1318
        %v1320 = vrot.slane %v1288, 1
        %v1321 = vrot.slane %v1290, 1
        %v1324 = vmax.f32 %v1288, %v1320
        %v1325 = vmax.f32 %v1290, %v1321
        %v1326 = vsub.f32 %v1288, %v1320
        %v1327 = vsub.f32 %v1290, %v1321
        %v1328 = vand.u32 2147483647, %v1326
        %v1329 = vand.u32 2147483647, %v1327
        %v1330 = vsub.f32 0.0, %v1328
        %v1331 = vsub.f32 0.0, %v1329
        %v1332 = vmul.f32 %v1330, 1.442695
        %v1333 = vpow.pop %v1332
        %v1334 = vmul.f32 %v1331, 1.442695
        %v1335 = vpow.pop %v1334
        %v1336 = vadd.f32 %v1333, 1.0
        %v1337 = vadd.f32 %v1335, 1.0
        %v1338 = vlog2.pop %v1336
        %v1339 = vmul.f32 %v1338, 0.6931472
        %v1340 = vlog2.pop %v1337
        %v1341 = vmul.f32 %v1340, 0.6931472
        %v1342 = vadd.f32 %v1324, %v1339
        %v1343 = vadd.f32 %v1325, %v1341
        %v1345 = vunpack.c.l.s4 1983009808
        %v1346 = vunpack.c.0.s8 %v1345
        %v1347 = vlaneseq
        %v1348 = vshrl.u32 %v1347, 7
        %v1349 = vsub.s32 %v1346, %v1348
        %v1350 = vrot.slane %v1305, %v1349
        %v1353 = vunpack.c.l.s4 1983009808
        %v1354 = vunpack.c.0.s8 %v1353
        %v1355 = vlaneseq
        %v1356 = vshrl.u32 %v1355, 7
        %v1357 = vsub.s32 %v1354, %v1356
        %v1358 = vrot.slane %v1300, %v1357
        %v1359 = vcombine.high %v1358, %v1358
        %v1360 = vrot.slane %v1359, 7
        %v1361 = vrot.slane %v1360, 2
        %v1363 = vsel %vm1318, %v1350, %v1361
        %v1365 = vlaneseq
        %v1366 = vshrl.u32 %v1365, 7
        %v1367 = vsub.s32 0, %v1366
        %v1368 = vrot.slane %v1363, %v1367
        %v1369 = vlaneseq
        %v1370 = vshrl.u32 %v1369, 7
        %v1371 = vsub.s32 2, %v1370
        %v1372 = vrot.slane %v1363, %v1371
        %v1375 = vsub.f32 %v1342, %v1368
        %v1376 = vsub.f32 %v1343, %v1372
        %v1377 = vsel %vm1319, 1, 0
        %v1378 = vcvt.s32.f32 %v1377
        %v1380 = vlaneseq
        %v1381 = vshrl.u32 %v1380, 7
        %v1382 = vsub.s32 0, %v1381
        %v1383 = vrot.slane %v1378, %v1382
        %v1384 = vlaneseq
        %v1385 = vshrl.u32 %v1384, 7
        %v1386 = vsub.s32 2, %v1385
        %v1387 = vrot.slane %v1378, %v1386
        %v1390 = vsel %vm660, %v1383, 0.0
        %v1391 = vsel %vm660, %v1387, 0.0
        %v1392 = vadd.f32 %v1390, %v1391
        %1393 = vadd.xlane.f32.xlu0 %v1392
        %v1394 = vpop.xlane.xlu0 %1393
        %v1395 = vrot.slane %v1394, 4
        %v1396 = vadd.f32 %v1394, %v1395
        %v1397 = vrot.slane %v1396, 2
        %v1398 = vadd.f32 %v1396, %v1397
        %v1399 = vrot.slane %v1398, 1
        %v1400 = vadd.f32 %v1398, %v1399
        %s1401 = vtos %v1400
        %v1404 = vcombine.low %v1375, %v1376
        %v1406 = vunpack.c.l.s4 1983009808
        %v1407 = vunpack.c.0.s8 %v1406
        %v1408 = vlaneseq
        %v1409 = vshrl.u32 %v1408, 7
        %v1410 = vsub.s32 %v1407, %v1409
        %v1411 = vrot.slane %v1404, %v1410
        %v1412 = vcombine.high %v1411, %v1411
        %v1413 = vrot.slane %v1412, 7
        %v1414 = vrot.slane %v1413, 2
        %v1416 = vsel %vm1319, %v1414, 0.0
        %v1418 = vlaneseq
        %v1419 = vshrl.u32 %v1418, 7
        %v1420 = vsub.s32 0, %v1419
        %v1421 = vrot.slane %v1416, %v1420
        %v1422 = vlaneseq
        %v1423 = vshrl.u32 %v1422, 7
        %v1424 = vsub.s32 2, %v1423
        %v1425 = vrot.slane %v1416, %v1424
        %v1428 = vsel %vm660, %v1421, 0.0
        %v1429 = vsel %vm660, %v1425, 0.0
        %v1430 = vadd.f32 %v1428, %v1429
        %1431 = vadd.xlane.f32.xlu0 %v1430
        %v1432 = vpop.xlane.xlu0 %1431
        %v1433 = vrot.slane %v1432, 4
        %v1434 = vadd.f32 %v1432, %v1433
        %v1435 = vrot.slane %v1434, 2
        %v1436 = vadd.f32 %v1434, %v1435
        %v1437 = vrot.slane %v1436, 1
        %v1438 = vadd.f32 %v1436, %v1437
        %s1439 = vtos %v1438
        %s1440 = smax.f32 %s1401, 1.0
        %v1441 = vstv %s1440
        %v1442 = vrcp.pop %v1441
        %s1443 = vtos %v1442
        %s1444 = smul.f32 %s1439, %s1443
        %p1445 = scmp.gt.f32.partialorder %s627, 0.0
        %s1446 = scalar_select %p1445, 1, 0
        %s1447 = scvt.s32.f32 %s1446
        %s1448 = smul.f32 %s1444, %s1447
        %s1449 = sadd.f32 %s1448, 0.0
        %v1450 = vrot.slane %v1288, 2
        %v1451 = vrot.slane %v1290, 2
        %v1454 = vmax.f32 %v1288, %v1450
        %v1455 = vmax.f32 %v1290, %v1451
        %v1456 = vsub.f32 %v1288, %v1450
        %v1457 = vsub.f32 %v1290, %v1451
        %v1458 = vand.u32 2147483647, %v1456
        %v1459 = vand.u32 2147483647, %v1457
        %v1460 = vsub.f32 0.0, %v1458
        %v1461 = vsub.f32 0.0, %v1459
        %v1462 = vmul.f32 %v1460, 1.442695
        %v1463 = vpow.pop %v1462
        %v1464 = vmul.f32 %v1461, 1.442695
        %v1465 = vpow.pop %v1464
        %v1466 = vadd.f32 %v1463, 1.0
        %v1467 = vadd.f32 %v1465, 1.0
        %v1468 = vlog2.pop %v1466
        %v1469 = vmul.f32 %v1468, 0.6931472
        %v1470 = vlog2.pop %v1467
        %v1471 = vmul.f32 %v1470, 0.6931472
        %v1472 = vadd.f32 %v1454, %v1469
        %v1473 = vadd.f32 %v1455, %v1471
        %v1475 = vsel %vm1318, %v1350, %v1359
        %v1477 = vlaneseq
        %v1478 = vshrl.u32 %v1477, 7
        %v1479 = vsub.s32 1, %v1478
        %v1480 = vrot.slane %v1475, %v1479
        %v1481 = vlaneseq
        %v1482 = vshrl.u32 %v1481, 7
        %v1483 = vsub.s32 3, %v1482
        %v1484 = vrot.slane %v1475, %v1483
        %v1487 = vsub.f32 %v1472, %v1480
        %v1488 = vsub.f32 %v1473, %v1484
        %v1489 = vlaneseq
        %v1490 = vshrl.u32 %v1489, 7
        %v1491 = vsub.s32 1, %v1490
        %v1492 = vrot.slane %v1378, %v1491
        %v1493 = vlaneseq
        %v1494 = vshrl.u32 %v1493, 7
        %v1495 = vsub.s32 3, %v1494
        %v1496 = vrot.slane %v1378, %v1495
        %v1499 = vsel %vm660, %v1492, 0.0
        %v1500 = vsel %vm660, %v1496, 0.0
        %v1501 = vadd.f32 %v1499, %v1500
        %1502 = vadd.xlane.f32.xlu0 %v1501
        %v1503 = vpop.xlane.xlu0 %1502
        %v1504 = vrot.slane %v1503, 4
        %v1505 = vadd.f32 %v1503, %v1504
        %v1506 = vrot.slane %v1505, 2
        %v1507 = vadd.f32 %v1505, %v1506
        %v1508 = vrot.slane %v1507, 1
        %v1509 = vadd.f32 %v1507, %v1508
        %s1510 = vtos %v1509
        %v1513 = vcombine.low %v1487, %v1488
        %v1515 = vunpack.c.l.s4 1983009808
        %v1516 = vunpack.c.0.s8 %v1515
        %v1517 = vlaneseq
        %v1518 = vshrl.u32 %v1517, 7
        %v1519 = vsub.s32 %v1516, %v1518
        %v1520 = vrot.slane %v1513, %v1519
        %v1521 = vcombine.high %v1520, %v1520
        %v1523 = vsel %vm1319, %v1521, 0.0
        %v1525 = vlaneseq
        %v1526 = vshrl.u32 %v1525, 7
        %v1527 = vsub.s32 1, %v1526
        %v1528 = vrot.slane %v1523, %v1527
        %v1529 = vlaneseq
        %v1530 = vshrl.u32 %v1529, 7
        %v1531 = vsub.s32 3, %v1530
        %v1532 = vrot.slane %v1523, %v1531
        %v1535 = vsel %vm660, %v1528, 0.0
        %v1536 = vsel %vm660, %v1532, 0.0
        %v1537 = vadd.f32 %v1535, %v1536
        %1538 = vadd.xlane.f32.xlu0 %v1537
        %v1539 = vpop.xlane.xlu0 %1538
        %v1540 = vrot.slane %v1539, 4
        %v1541 = vadd.f32 %v1539, %v1540
        %v1542 = vrot.slane %v1541, 2
        %v1543 = vadd.f32 %v1541, %v1542
        %v1544 = vrot.slane %v1543, 1
        %v1545 = vadd.f32 %v1543, %v1544
        %s1546 = vtos %v1545
        %s1547 = smax.f32 %s1510, 1.0
        %v1548 = vstv %s1547
        %v1549 = vrcp.pop %v1548
        %s1550 = vtos %v1549
        %s1551 = smul.f32 %s1546, %s1550
        %p1552 = scmp.gt.f32.partialorder %s653, 0.0
        %s1553 = scalar_select %p1552, 1, 0
        %s1554 = scvt.s32.f32 %s1553
        %s1555 = smul.f32 %s1551, %s1554
        %s1556 = sadd.f32 %s1449, %s1555
        %s1557 = scalar_lea.vmem %s373, 4
        %v1558 = vld [vmem:[%s1557] sm:$0xf]
        %vm1559 = vcmp.eq.f32.partialorder %v1558, 0.0
        %vm1560 = vcmp.eq.f32.partialorder %v1558, 1.0
        %vm1561 = vmor %vm1559, %vm1560
        %v1562 = vrot.slane %v1294, 1
        %v1563 = vrot.slane %v1296, 1
        %v1566 = vmax.f32 %v1294, %v1562
        %v1567 = vmax.f32 %v1296, %v1563
        %v1568 = vsub.f32 %v1294, %v1562
        %v1569 = vsub.f32 %v1296, %v1563
        %v1570 = vand.u32 2147483647, %v1568
        %v1571 = vand.u32 2147483647, %v1569
        %v1572 = vsub.f32 0.0, %v1570
        %v1573 = vsub.f32 0.0, %v1571
        %v1574 = vmul.f32 %v1572, 1.442695
        %v1575 = vpow.pop %v1574
        %v1576 = vmul.f32 %v1573, 1.442695
        %v1577 = vpow.pop %v1576
        %v1578 = vadd.f32 %v1575, 1.0
        %v1579 = vadd.f32 %v1577, 1.0
        %v1580 = vlog2.pop %v1578
        %v1581 = vmul.f32 %v1580, 0.6931472
        %v1582 = vlog2.pop %v1579
        %v1583 = vmul.f32 %v1582, 0.6931472
        %v1584 = vadd.f32 %v1566, %v1581
        %v1585 = vadd.f32 %v1567, %v1583
        %v1587 = vunpack.c.l.s4 1983009808
        %v1588 = vunpack.c.0.s8 %v1587
        %v1589 = vlaneseq
        %v1590 = vshrl.u32 %v1589, 7
        %v1591 = vsub.s32 %v1588, %v1590
        %v1592 = vrot.slane %v1306, %v1591
        %v1593 = vcombine.high %v1592, %v1592
        %v1595 = vrot.slane %v1592, 7
        %v1596 = vrot.slane %v1595, 2
        %v1598 = vsel %vm1560, %v1593, %v1596
        %v1600 = vlaneseq
        %v1601 = vshrl.u32 %v1600, 7
        %v1602 = vsub.s32 0, %v1601
        %v1603 = vrot.slane %v1598, %v1602
        %v1604 = vlaneseq
        %v1605 = vshrl.u32 %v1604, 7
        %v1606 = vsub.s32 2, %v1605
        %v1607 = vrot.slane %v1598, %v1606
        %v1610 = vsub.f32 %v1584, %v1603
        %v1611 = vsub.f32 %v1585, %v1607
        %v1612 = vsel %vm1561, 1, 0
        %v1613 = vcvt.s32.f32 %v1612
        %v1615 = vlaneseq
        %v1616 = vshrl.u32 %v1615, 7
        %v1617 = vsub.s32 0, %v1616
        %v1618 = vrot.slane %v1613, %v1617
        %v1619 = vlaneseq
        %v1620 = vshrl.u32 %v1619, 7
        %v1621 = vsub.s32 2, %v1620
        %v1622 = vrot.slane %v1613, %v1621
        %v1625 = vsel %vm660, %v1618, 0.0
        %v1626 = vsel %vm660, %v1622, 0.0
        %v1627 = vadd.f32 %v1625, %v1626
        %1628 = vadd.xlane.f32.xlu0 %v1627
        %v1629 = vpop.xlane.xlu0 %1628
        %v1630 = vrot.slane %v1629, 4
        %v1631 = vadd.f32 %v1629, %v1630
        %v1632 = vrot.slane %v1631, 2
        %v1633 = vadd.f32 %v1631, %v1632
        %v1634 = vrot.slane %v1633, 1
        %v1635 = vadd.f32 %v1633, %v1634
        %s1636 = vtos %v1635
        %v1639 = vcombine.low %v1610, %v1611
        %v1641 = vunpack.c.l.s4 1983009808
        %v1642 = vunpack.c.0.s8 %v1641
        %v1643 = vlaneseq
        %v1644 = vshrl.u32 %v1643, 7
        %v1645 = vsub.s32 %v1642, %v1644
        %v1646 = vrot.slane %v1639, %v1645
        %v1647 = vrot.slane %v1646, 7
        %v1648 = vrot.slane %v1647, 2
        %v1650 = vsel %vm1561, %v1648, 0.0
        %v1652 = vlaneseq
        %v1653 = vshrl.u32 %v1652, 7
        %v1654 = vsub.s32 0, %v1653
        %v1655 = vrot.slane %v1650, %v1654
        %v1656 = vlaneseq
        %v1657 = vshrl.u32 %v1656, 7
        %v1658 = vsub.s32 2, %v1657
        %v1659 = vrot.slane %v1650, %v1658
        %v1662 = vsel %vm660, %v1655, 0.0
        %v1663 = vsel %vm660, %v1659, 0.0
        %v1664 = vadd.f32 %v1662, %v1663
        %1665 = vadd.xlane.f32.xlu0 %v1664
        %v1666 = vpop.xlane.xlu0 %1665
        %v1667 = vrot.slane %v1666, 4
        %v1668 = vadd.f32 %v1666, %v1667
        %v1669 = vrot.slane %v1668, 2
        %v1670 = vadd.f32 %v1668, %v1669
        %v1671 = vrot.slane %v1670, 1
        %v1672 = vadd.f32 %v1670, %v1671
        %s1673 = vtos %v1672
        %s1674 = smax.f32 %s1636, 1.0
        %v1675 = vstv %s1674
        %v1676 = vrcp.pop %v1675
        %s1677 = vtos %v1676
        %s1678 = smul.f32 %s1673, %s1677
        %p1679 = scmp.gt.f32.partialorder %s1031, 0.0
        %s1680 = scalar_select %p1679, 1, 0
        %s1681 = scvt.s32.f32 %s1680
        %s1682 = smul.f32 %s1678, %s1681
        %s1683 = sadd.f32 %s1556, %s1682
        %v1684 = vrot.slane %v1294, 2
        %v1685 = vrot.slane %v1296, 2
        %v1688 = vmax.f32 %v1294, %v1684
        %v1689 = vmax.f32 %v1296, %v1685
        %v1690 = vsub.f32 %v1294, %v1684
        %v1691 = vsub.f32 %v1296, %v1685
        %v1692 = vand.u32 2147483647, %v1690
        %v1693 = vand.u32 2147483647, %v1691
        %v1694 = vsub.f32 0.0, %v1692
        %v1695 = vsub.f32 0.0, %v1693
        %v1696 = vmul.f32 %v1694, 1.442695
        %v1697 = vpow.pop %v1696
        %v1698 = vmul.f32 %v1695, 1.442695
        %v1699 = vpow.pop %v1698
        %v1700 = vadd.f32 %v1697, 1.0
        %v1701 = vadd.f32 %v1699, 1.0
        %v1702 = vlog2.pop %v1700
        %v1703 = vmul.f32 %v1702, 0.6931472
        %v1704 = vlog2.pop %v1701
        %v1705 = vmul.f32 %v1704, 0.6931472
        %v1706 = vadd.f32 %v1688, %v1703
        %v1707 = vadd.f32 %v1689, %v1705
        %v1709 = vsel %vm1560, %v1593, %v1592
        %v1711 = vlaneseq
        %v1712 = vshrl.u32 %v1711, 7
        %v1713 = vsub.s32 1, %v1712
        %v1714 = vrot.slane %v1709, %v1713
        %v1715 = vlaneseq
        %v1716 = vshrl.u32 %v1715, 7
        %v1717 = vsub.s32 3, %v1716
        %v1718 = vrot.slane %v1709, %v1717
        %v1721 = vsub.f32 %v1706, %v1714
        %v1722 = vsub.f32 %v1707, %v1718
        %v1723 = vlaneseq
        %v1724 = vshrl.u32 %v1723, 7
        %v1725 = vsub.s32 1, %v1724
        %v1726 = vrot.slane %v1613, %v1725
        %v1727 = vlaneseq
        %v1728 = vshrl.u32 %v1727, 7
        %v1729 = vsub.s32 3, %v1728
        %v1730 = vrot.slane %v1613, %v1729
        %v1733 = vsel %vm660, %v1726, 0.0
        %v1734 = vsel %vm660, %v1730, 0.0
        %v1735 = vadd.f32 %v1733, %v1734
        %1736 = vadd.xlane.f32.xlu0 %v1735
        %v1737 = vpop.xlane.xlu0 %1736
        %v1738 = vrot.slane %v1737, 4
        %v1739 = vadd.f32 %v1737, %v1738
        %v1740 = vrot.slane %v1739, 2
        %v1741 = vadd.f32 %v1739, %v1740
        %v1742 = vrot.slane %v1741, 1
        %v1743 = vadd.f32 %v1741, %v1742
        %s1744 = vtos %v1743
        %v1747 = vcombine.low %v1721, %v1722
        %v1749 = vunpack.c.l.s4 1983009808
        %v1750 = vunpack.c.0.s8 %v1749
        %v1751 = vlaneseq
        %v1752 = vshrl.u32 %v1751, 7
        %v1753 = vsub.s32 %v1750, %v1752
        %v1754 = vrot.slane %v1747, %v1753
        %v1756 = vsel %vm1561, %v1754, 0.0
        %v1758 = vlaneseq
        %v1759 = vshrl.u32 %v1758, 7
        %v1760 = vsub.s32 1, %v1759
        %v1761 = vrot.slane %v1756, %v1760
        %v1762 = vlaneseq
        %v1763 = vshrl.u32 %v1762, 7
        %v1764 = vsub.s32 3, %v1763
        %v1765 = vrot.slane %v1756, %v1764
        %v1768 = vsel %vm660, %v1761, 0.0
        %v1769 = vsel %vm660, %v1765, 0.0
        %v1770 = vadd.f32 %v1768, %v1769
        %1771 = vadd.xlane.f32.xlu0 %v1770
        %v1772 = vpop.xlane.xlu0 %1771
        %v1773 = vrot.slane %v1772, 4
        %v1774 = vadd.f32 %v1772, %v1773
        %v1775 = vrot.slane %v1774, 2
        %v1776 = vadd.f32 %v1774, %v1775
        %v1777 = vrot.slane %v1776, 1
        %v1778 = vadd.f32 %v1776, %v1777
        %s1779 = vtos %v1778
        %s1780 = smax.f32 %s1744, 1.0
        %v1781 = vstv %s1780
        %v1782 = vrcp.pop %v1781
        %s1783 = vtos %v1782
        %s1784 = smul.f32 %s1779, %s1783
        %p1785 = scmp.gt.f32.partialorder %s1057, 0.0
        %s1786 = scalar_select %p1785, 1, 0
        %s1787 = scvt.s32.f32 %s1786
        %s1788 = smul.f32 %s1784, %s1787
        %s1789 = sadd.f32 %s1683, %s1788
        %v1790 = vrcp.pop 2.0
        %s1791 = vtos %v1790
        %s1792 = smul.f32 %s1789, %s1791
        %v1793 = vstv %s1792
        %vm1794 = vcmask 0
        %1795 = vst.msk [vmem:[%s386] sm:$0x1] %vm1794, %v1793
        %s1796 = smul.u32 2, %s22
        %p1797 = scmp.lt.s32.totalorder %s1796, 3
        %s1798 = scalar_select %p1797, %s1796, 3
        %s1799 = smul.addr %s1798, 2
        %s1800 = smul.addr %s1799, 4
        %s1801 = scalar_lea.vmem %s5, %s1800
        %p1802 = scmp.lt.s32.totalorder %s22, 1
        %s1803 = scalar_select %p1802, %s22, 1
        %s1804 = scalar_lea.vmem %s6, %s1803
        // Predicated region
        $region53: #{tpu_custom_call.1} parent=39 // pred_check
          %p1805 = pneg %p165
        $region54: #{tpu_custom_call.1} parent=39 // pred_check_branch
          %1807 = sbr.rel (%p1805) target = $region56
        $region55: #{tpu_custom_call.1} parent=39 // pred_region
          %s1808 = smul.u32 2, %s22
        $region56: #{tpu_custom_call.1} parent=39 // pred_fallthru
          _
        // Predicated region
        $region57: #{tpu_custom_call.1} parent=39 // pred_check
          %p1809 = pneg %p191
        $region58: #{tpu_custom_call.1} parent=39 // pred_check_branch
          %1811 = sbr.rel (%p1809) target = $region60
        $region59: #{tpu_custom_call.1} parent=39 // pred_region
          _
        $region60: #{tpu_custom_call.1} parent=39 // pred_fallthru
          _
      $region40: #{tpu_custom_call.1} parent=5 // pred_fallthru
        _
      %p1812 = scmp.le.s32.totalorder 2, %s17
      // Predicated region
      $region61: #{tpu_custom_call.1} parent=5 // pred_check
        %p1813 = pneg %p1812
      $region62: #{tpu_custom_call.1} parent=5 // pred_check_branch
        %1815 = sbr.rel (%p1813) target = $region64
      $region63: #{tpu_custom_call.1} parent=5 // pred_region
        %s1816 = ssub.s32 %s17, 2
        // Predicated region
        $region65: #{tpu_custom_call.1} parent=63 // pred_check
          %p1817 = pneg %p171
        $region66: #{tpu_custom_call.1} parent=63 // pred_check_branch
          %1819 = sbr.rel (%p1817) target = $region68
        $region67: #{tpu_custom_call.1} parent=63 // pred_region
          %s1820 = smul.u32 2, %s23
          %p1821 = scmp.lt.s32.totalorder %s1820, 3
          %s1822 = scalar_select %p1821, %s1820, 3
          %s1823 = smul.addr %s1822, 2
          %s1824 = smul.addr %s1823, 4
          %s1825 = scalar_lea.vmem %s5, %s1824
        $region68: #{tpu_custom_call.1} parent=63 // pred_fallthru
          _
        // Predicated region
        $region69: #{tpu_custom_call.1} parent=63 // pred_check
          %p1826 = pneg %p197
        $region70: #{tpu_custom_call.1} parent=63 // pred_check_branch
          %1828 = sbr.rel (%p1826) target = $region72
        $region71: #{tpu_custom_call.1} parent=63 // pred_region
          %p1829 = scmp.lt.s32.totalorder %s23, 1
          %s1830 = scalar_select %p1829, %s23, 1
          %s1831 = scalar_lea.vmem %s6, %s1830
        $region72: #{tpu_custom_call.1} parent=63 // pred_fallthru
          _
      $region64: #{tpu_custom_call.1} parent=5 // pred_fallthru
        _
    $region6: #{tpu_custom_call.1} parent=1 // loop_footer
      %s21 = sadd.s32 1, %s17
    $region7: #{tpu_custom_call.1} parent=1 // loop_footer_branch
      %16 = sbr.rel target = $region3
    $region8: #{tpu_custom_call.1} parent=1 // loop_exit
      _
    %1832 = vsyncpa [#allocation3], 1
    %s1833 = scalar_lea.sflag [#allocation3], 1
    %1834 = vsyncpa %s1833, 1
    %1835 = vsyncpa [#allocation5], 1
    %s1836 = scalar_lea.sflag [#allocation5], 1
    %1837 = vsyncpa %s1836, 1

</llo_original>
